<compile_context>
chip_gen: v7x
topology: tpu7x:2x2x1
jax: 0.10.0
libtpu: 0.0.40
codegen_flags: <defaults>
</compile_context>

<pallas_src>
import jax
import jax.numpy as jnp
from jax import lax
from jax.experimental import pallas as pl
from jax.experimental.pallas import tpu as pltpu

# ----------------------------- config --------------------------------------
B = 8            # batch of id vectors
Z = 512          # feature dim (fixed by the module)
A = 4000         # anchor_size (small stand-in for 100000; deliberately NOT a TA multiple)
TA = 1024        # anchor tile along A.  At real A=100000 use 2048-4096 (bf16): keep
                 # 2 * TA * Z * 2B (double-buffered tile) well under the scoped VMEM limit.
NUM_SPLITS = 2   # leading 'parallel' grid axis -> 2 TensorCores on v7x; serial elsewhere

TILES_PER_SPLIT = pl.cdiv(A, NUM_SPLITS * TA)
A_PAD = NUM_SPLITS * TILES_PER_SPLIT * TA    # anchors zero-padded to this many rows

THRESHOLD = 0.6
MARGIN = 0.3


# ----------------------- fused preprocess + anchor match --------------------
def tracker_kernel(x_ref, anc_ref, best_d_out, best_i_out,
                   xn_sc, best_d_sc, best_i_sc):
    c = pl.program_id(0)          # anchor-range split (parallel across TCs on v7x)
    t = pl.program_id(1)          # tile within the split (reduction axis)

    @pl.when(t == 0)
    def _():
        # --- fused preprocess: L2 normalize + _check_same_similarity (tiny, f32) ---
        x = x_ref[...]                                                # (B, Z) f32
        norm = jnp.sqrt(jnp.sum(x * x, axis=-1, keepdims=True))      # (B, 1)
        xn = x / jnp.maximum(norm, 1e-12)                            # eps-clamped normalize

        gram = lax.dot_general(xn, xn, (((1,), (1,)), ((), ())),
                               preferred_element_type=jnp.float32)   # (B, B) = xn @ xn.T
        cos_d = 1.0 - gram
        mask = (cos_d < THRESHOLD).astype(jnp.float32)

        # PyTorch uses mask.sum(0) (column sums).  mask is exactly symmetric (same fp dot
        # either way), so row sums are bit-identical and lower as a plain lane reduce.
        denom = jnp.sum(mask, axis=-1, keepdims=True)                # (B, 1), always >= 1

        adjusted = jnp.dot(mask, xn, preferred_element_type=jnp.float32)   # (B, Z)
        xn_sc[...] = (adjusted / denom).astype(jnp.bfloat16)

        best_d_sc[...] = jnp.full_like(best_d_sc, jnp.inf)
        best_i_sc[...] = jnp.zeros_like(best_i_sc)

    # --- streamed anchor tile: d = |1 - cos - margin|, running argmin ---
    xn = xn_sc[...]                                                   # (B, Z) bf16
    anc = anc_ref[...]                                                # (TA, Z) bf16
    scores = lax.dot_general(xn, anc, (((1,), (1,)), ((), ())),
                             preferred_element_type=jnp.float32)      # (B, TA) f32
    d = jnp.abs((1.0 - scores) - MARGIN)

    col0 = (c * TILES_PER_SPLIT + t) * TA
    cols = lax.broadcasted_iota(jnp.int32, d.shape, 1) + col0
    d = jnp.where(cols < A, d, jnp.inf)                               # mask padded anchors

    local_min = jnp.min(d, axis=-1, keepdims=True)                    # (B, 1)
    big = jnp.int32(2 ** 30)
    local_arg = jnp.min(jnp.where(d == local_min, cols, big),
                        axis=-1, keepdims=True)                       # first occurrence in tile

    update = local_min < best_d_sc[...]                               # strict < keeps earliest tile
    best_i_sc[...] = jnp.where(update, local_arg, best_i_sc[...])
    best_d_sc[...] = jnp.where(update, local_min, best_d_sc[...])

    @pl.when(t == pl.num_programs(1) - 1)
    def _():
        best_d_out[0] = best_d_sc[...]
        best_i_out[0] = best_i_sc[...]


def anchor_match(id_vectors, anchors_norm_padded_bf16):
    return pl.pallas_call(
        tracker_kernel,
        out_shape=(
            jax.ShapeDtypeStruct((NUM_SPLITS, B, 1), jnp.float32),
            jax.ShapeDtypeStruct((NUM_SPLITS, B, 1), jnp.int32),
        ),
        grid_spec=pltpu.PrefetchScalarGridSpec(
            num_scalar_prefetch=0,
            grid=(NUM_SPLITS, TILES_PER_SPLIT),
            in_specs=[
                pl.BlockSpec((B, Z), lambda c, t: (0, 0)),
                pl.BlockSpec((TA, Z), lambda c, t: (c * TILES_PER_SPLIT + t, 0)),
            ],
            out_specs=[
                pl.BlockSpec((1, B, 1), lambda c, t: (c, 0, 0)),
                pl.BlockSpec((1, B, 1), lambda c, t: (c, 0, 0)),
            ],
            scratch_shapes=[
                pltpu.VMEM((B, Z), jnp.bfloat16),   # adjusted normalized id vectors
                pltpu.VMEM((B, 1), jnp.float32),    # running best distance
                pltpu.VMEM((B, 1), jnp.int32),      # running best index
            ],
        ),
        compiler_params=pltpu.CompilerParams(
            dimension_semantics=("parallel", "arbitrary"),
            vmem_limit_bytes=32 * 1024 * 1024,
        ),
    )(id_vectors, anchors_norm_padded_bf16)


# ------------------------------- wrapper ------------------------------------
def tracker_forward(id_vectors, anchors, anchors_normalized):
    """Stateless forward path of TrackerTorch (stored_v is None)."""
    anc_bf16 = anchors_normalized.astype(jnp.bfloat16)      # cast once: halves streamed bytes
    if A_PAD != A:
        anc_bf16 = jnp.pad(anc_bf16, ((0, A_PAD - A), (0, 0)))

    best_d, best_i = anchor_match(id_vectors, anc_bf16)     # (S, B, 1) each
    best_d = best_d[:, :, 0]                                 # (S, B)
    best_i = best_i[:, :, 0]                                 # (S, B)

    # Combine splits: argmin picks the first (lowest-index) split on ties, matching
    # torch.argmin first-occurrence semantics since splits cover increasing index ranges.
    win = jnp.argmin(best_d, axis=0)                         # (B,)
    idx = jnp.take_along_axis(best_i, win[None, :], axis=0)[0]

    anonymized_vector = jnp.take(anchors, idx, axis=0)       # anchors[idx] gather (glue)
    return anonymized_vector


tracker_forward_jit = jax.jit(tracker_forward)


# ------------------------ deterministic parameter init ----------------------
def make_anchors(key):
    k_mag, k_anc = jax.random.split(key)
    magnitude = 23.79 + 2.19 * jax.random.normal(k_mag, (A, 1), dtype=jnp.float32)
    anchors = jax.random.normal(k_anc, (A, Z), dtype=jnp.float32)
    anchors = anchors / jnp.linalg.norm(anchors, axis=-1, keepdims=True)
    anchors = anchors * magnitude
    anchors_normalized = anchors / jnp.linalg.norm(anchors, axis=-1, keepdims=True)
    return anchors, anchors_normalized


# --------------------------- pure-JAX reference ------------------------------
def reference_preprocess_and_mind(id_vectors, anchors_normalized):
    hi = jax.lax.Precision.HIGHEST
    xn = id_vectors / jnp.linalg.norm(id_vectors, axis=-1, keepdims=True)
    cos_d = 1.0 - jnp.matmul(xn, xn.T, precision=hi)
    mask = (cos_d < THRESHOLD).astype(jnp.float32)
    denom = mask.sum(axis=0)                                  # column sums (PyTorch semantics)
    adjusted = jnp.matmul(mask, xn, precision=hi) / denom[:, None]
    d = jnp.abs((1.0 - jnp.matmul(adjusted, anchors_normalized.T, precision=hi)) - MARGIN)
    return adjusted, jnp.min(d, axis=-1)


if __name__ == "__main__":
    root = jax.random.PRNGKey(0)
    k_params, k_input = jax.random.split(root)

    anchors, anchors_normalized = make_anchors(k_params)
    id_vectors = jax.random.normal(k_input, (B, Z), dtype=jnp.float32)

    out = tracker_forward_jit(id_vectors, anchors, anchors_normalized)
    out = jax.block_until_ready(out)

    assert out.shape == (B, Z) and out.dtype == jnp.float32

    # Correctness: the anchor the kernel picked must be (near-)optimal in f32 distance.
    # Exact index equality is not required (bf16 streaming can flip near-ties); instead the
    # f32 distance of the selected anchor must match the f32 optimum within bf16 rounding.
    adjusted_ref, d_ref_min = reference_preprocess_and_mind(id_vectors, anchors_normalized)
    sel_norm = out / jnp.linalg.norm(out, axis=-1, keepdims=True)     # = anchors_normalized[idx]
    d_sel = jnp.abs((1.0 - jnp.sum(adjusted_ref * sel_norm, axis=-1)) - MARGIN)
    assert bool(jnp.all(jnp.abs(d_sel - d_ref_min) < 3e-2)), "selected anchor not near-optimal"

    print("KERNEL_OK")
</pallas_src>

<mosaic_0001>
module attributes {stable_mosaic.version = 11 : i64} {
  func.func @tracker_kernel(%arg0: i32, %arg1: i32, %arg2: memref<8x512xf32, #tpu.memory_space<vmem>>, %arg3: memref<1024x512xbf16, #tpu.memory_space<vmem>>, %arg4: memref<1x8x1xf32, #tpu.memory_space<vmem>>, %arg5: memref<1x8x1xi32, #tpu.memory_space<vmem>>, %arg6: memref<8x512xbf16, #tpu.memory_space<vmem>>, %arg7: memref<8x1xf32, #tpu.memory_space<vmem>>, %arg8: memref<8x1xi32, #tpu.memory_space<vmem>>) attributes {dimension_semantics = [#tpu.dimension_semantics<parallel>, #tpu.dimension_semantics<arbitrary>], iteration_bounds = array<i64: 2, 2>, scalar_prefetch = 0 : i64, scratch_operands = 3 : i64, tpu.core_type = #tpu.core_type<tc>, window_params = [{pipeline_mode = #tpu.pipeline_mode<synchronous>, transform_indices = @transform_0, window_bounds = array<i64: 8, 512>}, {transform_indices = @transform_1, window_bounds = array<i64: 1024, 512>}, {transform_indices = @transform_2, window_bounds = array<i64: 1, 8, 1>}, {transform_indices = @transform_3, window_bounds = array<i64: 1, 8, 1>}]} {
    %c0_i32 = arith.constant 0 : i32
    %0 = arith.cmpi eq, %arg1, %c0_i32 : i32
    %1 = arith.extui %0 : i1 to i32
    %c0_i32_0 = arith.constant 0 : i32
    %2 = arith.cmpi ne, %1, %c0_i32_0 : i32
    scf.if %2 {
      %c0_20 = arith.constant 0 : index
      %c0_21 = arith.constant 0 : index
      %40 = vector.load %arg2[%c0_20, %c0_21] : memref<8x512xf32, #tpu.memory_space<vmem>>, vector<8x512xf32>
      %41 = arith.mulf %40, %40 : vector<8x512xf32>
      %cst_22 = arith.constant dense<0.000000e+00> : vector<8xf32>
      %42 = vector.multi_reduction <add>, %41, %cst_22 [1] : vector<8x512xf32> to vector<8xf32>
      %43 = vector.shape_cast %42 : vector<8xf32> to vector<8x1xf32>
      %44 = math.sqrt %43 : vector<8x1xf32>
      %cst_23 = arith.constant 9.99999996E-13 : f32
      %45 = vector.broadcast %cst_23 : f32 to vector<8x1xf32>
      %46 = arith.maximumf %44, %45 : vector<8x1xf32>
      %47 = vector.broadcast %46 : vector<8x1xf32> to vector<8x512xf32>
      %48 = arith.divf %40, %47 : vector<8x512xf32>
      %cst_24 = arith.constant dense<0.000000e+00> : vector<8x8xf32>
      %49 = tpu.matmul %48, %48, %cst_24 {dimension_numbers = #tpu.dot_dimension_numbers<[1], [1], [0], [0], [0, 0, 1, 0], [], []>} : vector<8x512xf32>, vector<8x512xf32>, vector<8x8xf32> -> vector<8x8xf32>
      %cst_25 = arith.constant 1.000000e+00 : f32
      %50 = vector.broadcast %cst_25 : f32 to vector<8x8xf32>
      %51 = arith.subf %50, %49 : vector<8x8xf32>
      %cst_26 = arith.constant 6.000000e-01 : f32
      %52 = vector.broadcast %cst_26 : f32 to vector<8x8xf32>
      %53 = arith.cmpf olt, %51, %52 : vector<8x8xf32>
      %54 = arith.extui %53 : vector<8x8xi1> to vector<8x8xi32>
      %55 = arith.sitofp %54 : vector<8x8xi32> to vector<8x8xf32>
      %cst_27 = arith.constant dense<0.000000e+00> : vector<8xf32>
      %56 = vector.multi_reduction <add>, %55, %cst_27 [1] : vector<8x8xf32> to vector<8xf32>
      %57 = vector.shape_cast %56 : vector<8xf32> to vector<8x1xf32>
      %cst_28 = arith.constant dense<0.000000e+00> : vector<8x512xf32>
      %58 = tpu.matmul %55, %48, %cst_28 {dimension_numbers = #tpu.dot_dimension_numbers<[1], [0], [0], [1], [0, 0, 1, 1], [], []>} : vector<8x8xf32>, vector<8x512xf32>, vector<8x512xf32> -> vector<8x512xf32>
      %59 = vector.broadcast %57 : vector<8x1xf32> to vector<8x512xf32>
      %60 = arith.divf %58, %59 : vector<8x512xf32>
      %61 = arith.truncf %60 : vector<8x512xf32> to vector<8x512xbf16>
      %c0_29 = arith.constant 0 : index
      %c0_30 = arith.constant 0 : index
      %62 = vector.load %arg6[%c0_29, %c0_30] : memref<8x512xbf16, #tpu.memory_space<vmem>>, vector<8x512xbf16>
      tpu.vector_store %arg6[%c0_29, %c0_30], %61 {strides = array<i32>} : memref<8x512xbf16, #tpu.memory_space<vmem>>, vector<8x512xbf16>,
      %cst_31 = arith.constant 0x7F800000 : f32
      %63 = vector.broadcast %cst_31 : f32 to vector<8x1xf32>
      %c0_32 = arith.constant 0 : index
      %c0_33 = arith.constant 0 : index
      %64 = vector.load %arg7[%c0_32, %c0_33] : memref<8x1xf32, #tpu.memory_space<vmem>>, vector<8x1xf32>
      tpu.vector_store %arg7[%c0_32, %c0_33], %63 {strides = array<i32>} : memref<8x1xf32, #tpu.memory_space<vmem>>, vector<8x1xf32>,
      %c0_i32_34 = arith.constant 0 : i32
      %65 = vector.broadcast %c0_i32_34 : i32 to vector<8x1xi32>
      %c0_35 = arith.constant 0 : index
      %c0_36 = arith.constant 0 : index
      %66 = vector.load %arg8[%c0_35, %c0_36] : memref<8x1xi32, #tpu.memory_space<vmem>>, vector<8x1xi32>
      tpu.vector_store %arg8[%c0_35, %c0_36], %65 {strides = array<i32>} : memref<8x1xi32, #tpu.memory_space<vmem>>, vector<8x1xi32>,
    } else {
    }
    %c0 = arith.constant 0 : index
    %c0_1 = arith.constant 0 : index
    %3 = vector.load %arg6[%c0, %c0_1] : memref<8x512xbf16, #tpu.memory_space<vmem>>, vector<8x512xbf16>
    %c0_2 = arith.constant 0 : index
    %c0_3 = arith.constant 0 : index
    %4 = vector.load %arg3[%c0_2, %c0_3] : memref<1024x512xbf16, #tpu.memory_space<vmem>>, vector<1024x512xbf16>
    %cst = arith.constant dense<0.000000e+00> : vector<8x1024xf32>
    %5 = tpu.matmul %3, %4, %cst {dimension_numbers = #tpu.dot_dimension_numbers<[1], [1], [0], [0], [0, 0, 1, 0], [], []>} : vector<8x512xbf16>, vector<1024x512xbf16>, vector<8x1024xf32> -> vector<8x1024xf32>
    %cst_4 = arith.constant 1.000000e+00 : f32
    %6 = vector.broadcast %cst_4 : f32 to vector<8x1024xf32>
    %7 = arith.subf %6, %5 : vector<8x1024xf32>
    %cst_5 = arith.constant 3.000000e-01 : f32
    %8 = vector.broadcast %cst_5 : f32 to vector<8x1024xf32>
    %9 = arith.subf %7, %8 : vector<8x1024xf32>
    %10 = math.absf %9 : vector<8x1024xf32>
    %c2_i32 = arith.constant 2 : i32
    %11 = arith.muli %arg0, %c2_i32 : i32
    %12 = arith.addi %11, %arg1 : i32
    %c1024_i32 = arith.constant 1024 : i32
    %13 = arith.muli %12, %c1024_i32 : i32
    %14 = tpu.iota {dimensions = array<i32: 1>} : vector<8x1024xi32>
    %15 = vector.broadcast %13 : i32 to vector<8x1024xi32>
    %16 = arith.addi %14, %15 : vector<8x1024xi32>
    %c4000_i32 = arith.constant 4000 : i32
    %17 = vector.broadcast %c4000_i32 : i32 to vector<8x1024xi32>
    %18 = arith.cmpi slt, %16, %17 : vector<8x1024xi32>
    %cst_6 = arith.constant 0x7F800000 : f32
    %19 = vector.broadcast %cst_6 : f32 to vector<8x1024xf32>
    %20 = arith.select %18, %10, %19 : vector<8x1024xi1>, vector<8x1024xf32>
    %cst_7 = arith.constant dense<0x7F800000> : vector<8xf32>
    %21 = vector.multi_reduction <minimumf>, %20, %cst_7 [1] : vector<8x1024xf32> to vector<8xf32>
    %22 = vector.shape_cast %21 : vector<8xf32> to vector<8x1xf32>
    %23 = vector.broadcast %22 : vector<8x1xf32> to vector<8x1024xf32>
    %24 = arith.cmpf oeq, %20, %23 : vector<8x1024xf32>
    %c1073741824_i32 = arith.constant 1073741824 : i32
    %25 = vector.broadcast %c1073741824_i32 : i32 to vector<8x1024xi32>
    %26 = arith.select %24, %16, %25 : vector<8x1024xi1>, vector<8x1024xi32>
    %cst_8 = arith.constant dense<2147483647> : vector<8xi32>
    %27 = vector.multi_reduction <minsi>, %26, %cst_8 [1] : vector<8x1024xi32> to vector<8xi32>
    %28 = vector.shape_cast %27 : vector<8xi32> to vector<8x1xi32>
    %c0_9 = arith.constant 0 : index
    %c0_10 = arith.constant 0 : index
    %29 = vector.load %arg7[%c0_9, %c0_10] : memref<8x1xf32, #tpu.memory_space<vmem>>, vector<8x1xf32>
    %30 = arith.cmpf olt, %22, %29 : vector<8x1xf32>
    %c0_11 = arith.constant 0 : index
    %c0_12 = arith.constant 0 : index
    %31 = vector.load %arg8[%c0_11, %c0_12] : memref<8x1xi32, #tpu.memory_space<vmem>>, vector<8x1xi32>
    %32 = arith.select %30, %28, %31 : vector<8x1xi1>, vector<8x1xi32>
    %c0_13 = arith.constant 0 : index
    %c0_14 = arith.constant 0 : index
    %33 = vector.load %arg8[%c0_13, %c0_14] : memref<8x1xi32, #tpu.memory_space<vmem>>, vector<8x1xi32>
    tpu.vector_store %arg8[%c0_13, %c0_14], %32 {strides = array<i32>} : memref<8x1xi32, #tpu.memory_space<vmem>>, vector<8x1xi32>,
    %c0_15 = arith.constant 0 : index
    %c0_16 = arith.constant 0 : index
    %34 = vector.load %arg7[%c0_15, %c0_16] : memref<8x1xf32, #tpu.memory_space<vmem>>, vector<8x1xf32>
    %35 = arith.select %30, %22, %34 : vector<8x1xi1>, vector<8x1xf32>
    %c0_17 = arith.constant 0 : index
    %c0_18 = arith.constant 0 : index
    %36 = vector.load %arg7[%c0_17, %c0_18] : memref<8x1xf32, #tpu.memory_space<vmem>>, vector<8x1xf32>
    tpu.vector_store %arg7[%c0_17, %c0_18], %35 {strides = array<i32>} : memref<8x1xf32, #tpu.memory_space<vmem>>, vector<8x1xf32>,
    %c1_i32 = arith.constant 1 : i32
    %37 = arith.cmpi eq, %arg1, %c1_i32 : i32
    %38 = arith.extui %37 : i1 to i32
    %c0_i32_19 = arith.constant 0 : i32
    %39 = arith.cmpi ne, %38, %c0_i32_19 : i32
    scf.if %39 {
      %c0_20 = arith.constant 0 : index
      %c0_21 = arith.constant 0 : index
      %40 = vector.load %arg7[%c0_20, %c0_21] : memref<8x1xf32, #tpu.memory_space<vmem>>, vector<8x1xf32>
      %c0_22 = arith.constant 0 : index
      %c0_23 = arith.constant 0 : index
      %c0_24 = arith.constant 0 : index
      %41 = vector.load %arg4[%c0_22, %c0_23, %c0_24] : memref<1x8x1xf32, #tpu.memory_space<vmem>>, vector<1x8x1xf32>
      %42 = vector.shape_cast %41 : vector<1x8x1xf32> to vector<8x1xf32>
      %43 = vector.shape_cast %40 : vector<8x1xf32> to vector<1x8x1xf32>
      tpu.vector_store %arg4[%c0_22, %c0_23, %c0_24], %43 {strides = array<i32>} : memref<1x8x1xf32, #tpu.memory_space<vmem>>, vector<1x8x1xf32>,
      %c0_25 = arith.constant 0 : index
      %c0_26 = arith.constant 0 : index
      %44 = vector.load %arg8[%c0_25, %c0_26] : memref<8x1xi32, #tpu.memory_space<vmem>>, vector<8x1xi32>
      %c0_27 = arith.constant 0 : index
      %c0_28 = arith.constant 0 : index
      %c0_29 = arith.constant 0 : index
      %45 = vector.load %arg5[%c0_27, %c0_28, %c0_29] : memref<1x8x1xi32, #tpu.memory_space<vmem>>, vector<1x8x1xi32>
      %46 = vector.shape_cast %45 : vector<1x8x1xi32> to vector<8x1xi32>
      %47 = vector.shape_cast %44 : vector<8x1xi32> to vector<1x8x1xi32>
      tpu.vector_store %arg5[%c0_27, %c0_28, %c0_29], %47 {strides = array<i32>} : memref<1x8x1xi32, #tpu.memory_space<vmem>>, vector<1x8x1xi32>,
    } else {
    }
    return
  }
  func.func @transform_0(%arg0: i32, %arg1: i32) -> (i32, i32) {
    %c0_i32 = arith.constant 0 : i32
    %c0_i32_0 = arith.constant 0 : i32
    %c0_i32_1 = arith.constant 0 : i32
    return %c0_i32, %c0_i32_0 : i32, i32
  }
  func.func @transform_1(%arg0: i32, %arg1: i32) -> (i32, i32) {
    %c2_i32 = arith.constant 2 : i32
    %0 = arith.muli %arg0, %c2_i32 : i32
    %1 = arith.addi %0, %arg1 : i32
    %c0_i32 = arith.constant 0 : i32
    %c0_i32_0 = arith.constant 0 : i32
    return %1, %c0_i32 : i32, i32
  }
  func.func @transform_2(%arg0: i32, %arg1: i32) -> (i32, i32, i32) {
    %c0_i32 = arith.constant 0 : i32
    %c0_i32_0 = arith.constant 0 : i32
    %c0_i32_1 = arith.constant 0 : i32
    return %arg0, %c0_i32, %c0_i32_0 : i32, i32, i32
  }
  func.func @transform_3(%arg0: i32, %arg1: i32) -> (i32, i32, i32) {
    %c0_i32 = arith.constant 0 : i32
    %c0_i32_0 = arith.constant 0 : i32
    %c0_i32_1 = arith.constant 0 : i32
    return %arg0, %c0_i32, %c0_i32_0 : i32, i32, i32
  }
}

</mosaic_0001>

<llo_original>
// kernel: tracker_forward.1
$region0: #{tracker_forward.1}
  #allocation0 [shape = 'u32[]', space=smem, size = 0x4, offset = 0x4, fixed_abs, tag = 'smem constant byte address 0x4 - core index']
  #allocation1 [shape = 'u32[144,128]{1,0:T(1,128)}', space=vmem, size = 0x12000, scoped, tag = 'internal scratch']
  #allocation2 [shape = 'bf16[8,512]{1,0:T(8,128)(2,1)}', space=vmem, size = 0x2000, scoped, tag = 'scratch operand']
  #allocation3 [shape = 'f32[8,1]{1,0:T(8,128)}', space=vmem, size = 0x1000, scoped, tag = 'scratch operand']
  #allocation4 [shape = 's32[8,1]{1,0:T(8,128)}', space=vmem, size = 0x1000, scoped, tag = 'scratch operand']
  %s0 = inlined_call_operand.vmem [shape: f32[8,512], index: 0, kind: input, shape index: {}]
  %s1 = inlined_call_operand.vmem [shape: bf16[4096,512], index: 1, kind: input, shape index: {}]
  %s2 = inlined_call_operand.vmem [shape: f32[2,8,1], index: 2, kind: output, shape index: {0}]
  %s3 = inlined_call_operand.vmem [shape: s32[2,8,1], index: 3, kind: output, shape index: {1}]
  %4 = xla_tuple %s2, %s3
  %s5 = sld [smem:[#allocation0]]
  $region57: #{tracker_forward.1} parent=0
    _
  %s7 = ssub.s32 1, %s5
  %s8 = scalar_select 0, %s7, %s5
  loop: start=0, step=1, limit=6
  $region2: #{tracker_forward.1} parent=0 // loop_pre_header
    _
  $region3: #{tracker_forward.1} parent=0 // loop_header
    %s10 = sphi 0, %s14
    %p11 = scmp.ge.s32.totalorder %s10, 6
    %s17 = sphi 0, %s29
    %s18 = sphi 0, %s25
    %s19 = sphi 0, %s17
    %s20 = sphi 0, %s18
    %s21 = sphi 0, %s19
    %s22 = sphi 0, %s20
    %s30 = sphi 0, %s30
    %s32 = sphi 0, %s30
    %s33 = sphi 0, %s32
    %s47 = sphi 0, %s33
    %s57 = sphi 0, %s59
    %s60 = sphi 0, %s57
    %s61 = sphi 0, %s60
    %s77 = sphi 0, %s61
    %s83 = sphi 0, %s85
    %s86 = sphi 0, %s83
    %s87 = sphi 0, %s86
    %s103 = sphi 0, %s87
    %s109 = sphi 0, %s111
    %s112 = sphi 0, %s109
    %s113 = sphi 0, %s112
    %s129 = sphi 0, %s113
  $region4: #{tracker_forward.1} parent=0 // loop_header_branch
    %13 = sbr.rel (%p11) target = $region8
  $region5: #{tracker_forward.1} parent=0 // loop_body
    %s15 = ssub.s32 %s10, 1
    %s16 = ssub.s32 %s10, 2
    %s23 = sadd.s32 1, %s18
    %p24 = scmp.ge.s32.totalorder %s23, 2
    %s25 = scalar_select %p24, 0, %s23
    %s26 = sadd.s32 1, %s17
    %s27 = scalar_select %p24, %s26, %s17
    %p28 = scmp.ge.s32.totalorder %s27, 2
    %s29 = scalar_select %p28, 0, %s27
    %s31 = sadd.s32 %s30, 1
    %p34 = scmp.eq.s32.totalorder %s10, 3
    %p35 = scmp.ne.s32.totalorder %s30, %s32
    %p36 = scmp.eq.s32.totalorder %s10, 0
    %p37 = por %p35, %p36
    %p38 = scmp.ne.s32.totalorder %s30, %s32
    %p39 = scmp.eq.s32.totalorder %s15, 3
    %p40 = por %p38, %p39
    %p41 = scmp.ne.s32.totalorder %s32, %s33
    %p42 = scmp.eq.s32.totalorder %s15, 0
    %p43 = por %p41, %p42
    %p44 = scmp.ne.s32.totalorder %s32, %s33
    %p45 = scmp.eq.s32.totalorder %s16, 3
    %p46 = por %p44, %p45
    %p48 = scmp.ne.s32.totalorder %s33, %s47
    %p49 = scmp.eq.s32.totalorder %s16, 0
    %p50 = por %p48, %p49
    %s51 = smul.u32 %s17, 2
    %s52 = sadd.s32 %s51, %s18
    %s53 = smul.u32 %s29, 2
    %s54 = sadd.s32 %s53, %s25
    %s55 = ssub.s32 %s52, %s54
    %p56 = scmp.eq.s32.totalorder %s55, 0
    %s58 = sadd.s32 %s57, 1
    %s59 = scalar_select %p56, %s57, %s58
    %p62 = pneg %p56
    %p63 = scmp.eq.s32.totalorder %s10, 3
    %p64 = por %p62, %p63
    %p65 = scmp.ne.s32.totalorder %s57, %s60
    %p66 = scmp.eq.s32.totalorder %s10, 0
    %p67 = por %p65, %p66
    %p68 = scmp.ne.s32.totalorder %s57, %s60
    %p69 = scmp.eq.s32.totalorder %s15, 3
    %p70 = por %p68, %p69
    %p71 = scmp.ne.s32.totalorder %s60, %s61
    %p72 = scmp.eq.s32.totalorder %s15, 0
    %p73 = por %p71, %p72
    %p74 = scmp.ne.s32.totalorder %s60, %s61
    %p75 = scmp.eq.s32.totalorder %s16, 3
    %p76 = por %p74, %p75
    %p78 = scmp.ne.s32.totalorder %s61, %s77
    %p79 = scmp.eq.s32.totalorder %s16, 0
    %p80 = por %p78, %p79
    %s81 = ssub.s32 %s17, %s29
    %p82 = scmp.eq.s32.totalorder %s81, 0
    %s84 = sadd.s32 %s83, 1
    %s85 = scalar_select %p82, %s83, %s84
    %p88 = pneg %p82
    %p89 = scmp.eq.s32.totalorder %s10, 3
    %p90 = por %p88, %p89
    %p91 = scmp.ne.s32.totalorder %s83, %s86
    %p92 = scmp.eq.s32.totalorder %s10, 0
    %p93 = por %p91, %p92
    %p94 = scmp.ne.s32.totalorder %s83, %s86
    %p95 = scmp.eq.s32.totalorder %s15, 3
    %p96 = por %p94, %p95
    %p97 = scmp.ne.s32.totalorder %s86, %s87
    %p98 = scmp.eq.s32.totalorder %s15, 0
    %p99 = por %p97, %p98
    %p100 = scmp.ne.s32.totalorder %s86, %s87
    %p101 = scmp.eq.s32.totalorder %s16, 3
    %p102 = por %p100, %p101
    %p104 = scmp.ne.s32.totalorder %s87, %s103
    %p105 = scmp.eq.s32.totalorder %s16, 0
    %p106 = por %p104, %p105
    %s107 = ssub.s32 %s17, %s29
    %p108 = scmp.eq.s32.totalorder %s107, 0
    %s110 = sadd.s32 %s109, 1
    %s111 = scalar_select %p108, %s109, %s110
    %p114 = pneg %p108
    %p115 = scmp.eq.s32.totalorder %s10, 3
    %p116 = por %p114, %p115
    %p117 = scmp.ne.s32.totalorder %s109, %s112
    %p118 = scmp.eq.s32.totalorder %s10, 0
    %p119 = por %p117, %p118
    %p120 = scmp.ne.s32.totalorder %s109, %s112
    %p121 = scmp.eq.s32.totalorder %s15, 3
    %p122 = por %p120, %p121
    %p123 = scmp.ne.s32.totalorder %s112, %s113
    %p124 = scmp.eq.s32.totalorder %s15, 0
    %p125 = por %p123, %p124
    %p126 = scmp.ne.s32.totalorder %s112, %s113
    %p127 = scmp.eq.s32.totalorder %s16, 3
    %p128 = por %p126, %p127
    %p130 = scmp.ne.s32.totalorder %s113, %s129
    %p131 = scmp.eq.s32.totalorder %s16, 0
    %p132 = por %p130, %p131
    %p133 = scmp.le.s32.totalorder 1, %s10
    %p134 = scmp.lt.s32.totalorder %s10, 5
    %p135 = pnand %p133, %p134
    %p136 = pneg %p135
    // Predicated region
    $region9: #{tracker_forward.1} parent=5 // pred_check
      _
    $region10: #{tracker_forward.1} parent=5 // pred_check_branch
      %138 = sbr.rel (%p135) target = $region12
    $region11: #{tracker_forward.1} parent=5 // pred_region
      %s139 = ssub.s32 %s10, 1
      // Predicated region
      $region13: #{tracker_forward.1} parent=11 // pred_check
        %p140 = pneg %p43
      $region14: #{tracker_forward.1} parent=11 // pred_check_branch
        %142 = sbr.rel (%p140) target = $region16
      $region15: #{tracker_forward.1} parent=11 // pred_region
        _
      $region16: #{tracker_forward.1} parent=11 // pred_fallthru
        _
    $region12: #{tracker_forward.1} parent=5 // pred_fallthru
      _
    %p143 = scmp.lt.s32.totalorder %s10, 4
    // Predicated region
    $region17: #{tracker_forward.1} parent=5 // pred_check
      %p144 = pneg %p143
    $region18: #{tracker_forward.1} parent=5 // pred_check_branch
      %146 = sbr.rel (%p144) target = $region20
    $region19: #{tracker_forward.1} parent=5 // pred_region
      // Predicated region
      $region21: #{tracker_forward.1} parent=19 // pred_check
        %p147 = pneg %p67
      $region22: #{tracker_forward.1} parent=19 // pred_check_branch
        %149 = sbr.rel (%p147) target = $region24
      $region23: #{tracker_forward.1} parent=19 // pred_region
        %s150 = smul.u32 %s17, 2
        %s151 = sadd.s32 %s150, %s18
        %s152 = smul.u32 128, %s151
        %p153 = scmp.lt.s32.totalorder %s152, 511
        %s154 = scalar_select %p153, %s152, 511
        %s155 = smul.addr %s154, 4
        %s156 = smul.addr %s155, 4
        %s157 = scalar_lea.vmem %s1, %s156
        %s158 = smul.u32 %s17, 2
        %s159 = sadd.s32 %s158, %s18
        %s160 = smul.u32 128, %s159
      $region24: #{tracker_forward.1} parent=19 // pred_fallthru
        _
    $region20: #{tracker_forward.1} parent=5 // pred_fallthru
      _
    %p161 = scmp.le.s32.totalorder 1, %s10
    %p162 = scmp.lt.s32.totalorder %s10, 5
    %p163 = pnand %p161, %p162
    %p164 = pneg %p163
    // Predicated region
    $region25: #{tracker_forward.1} parent=5 // pred_check
      _
    $region26: #{tracker_forward.1} parent=5 // pred_check_branch
      %166 = sbr.rel (%p163) target = $region28
    $region27: #{tracker_forward.1} parent=5 // pred_region
      %s167 = ssub.s32 %s10, 1
      %p168 = pneg %p43
      %p169 = pneg %p40
      %s170 = smul.u32 %s19, 2
      %s171 = sadd.s32 %s170, %s20
      %s172 = smul.u32 128, %s171
      %p173 = scmp.lt.s32.totalorder %s172, 511
      %s174 = scalar_select %p173, %s172, 511
      %s175 = smul.addr %s174, 4
      %s176 = smul.addr %s175, 4
      %s177 = scalar_lea.vmem %s1, %s176
      %p178 = pneg %p73
      %p179 = pneg %p70
      %p180 = pneg %p99
      %p181 = pneg %p96
      %p182 = scmp.lt.s32.totalorder %s19, 1
      %s183 = scalar_select %p182, %s19, 1
      %s184 = smul.addr %s183, 8
      %s185 = scalar_lea.vmem %s2, %s184
      %p186 = pneg %p125
      %p187 = pneg %p122
      %p188 = scmp.lt.s32.totalorder %s19, 1
      %s189 = scalar_select %p188, %s19, 1
      %s190 = smul.addr %s189, 8
      %s191 = scalar_lea.vmem %s3, %s190
      %s192 = smul.u32 %s19, 2
      %s193 = sadd.s32 %s192, %s20
      %s194 = smul.u32 128, %s193
      %p195 = scmp.lt.s32.totalorder %s194, 511
      %s196 = scalar_select %p195, %s194, 511
      %s197 = smul.addr %s196, 4
      %s198 = smul.addr %s197, 4
      %s199 = scalar_lea.vmem %s1, %s198
      %s200 = smul.u32 %s19, 2
      %s201 = sadd.s32 %s200, %s20
      %s202 = smul.u32 128, %s201
      %p203 = scmp.lt.s32.totalorder %s19, 1
      %s204 = scalar_select %p203, %s19, 1
      %s205 = smul.addr %s204, 8
      %s206 = scalar_lea.vmem %s2, %s205
      %p207 = scmp.lt.s32.totalorder %s19, 1
      %s208 = scalar_select %p207, %s19, 1
      %s209 = smul.addr %s208, 8
      %s210 = scalar_lea.vmem %s3, %s209
      %p211 = scmp.eq.s32.totalorder %s20, 0
      // Predicated region
      $region29: #{tracker_forward.1} parent=27 // pred_check
        %p212 = pneg %p211
      $region30: #{tracker_forward.1} parent=27 // pred_check_branch
        %214 = sbr.rel (%p212) target = $region32
      $region31: #{tracker_forward.1} parent=27 // pred_region
        %v215 = vld [vmem:[%s0] sm:$0xff]
        %v216 = vld [vmem:[%s0 + $0x8] sm:$0xff]
        %v217 = vld [vmem:[%s0 + $0x10] sm:$0xff]
        %v218 = vld [vmem:[%s0 + $0x18] sm:$0xff]
        %v219 = vmul.f32 %v215, %v215
        %v220 = vmul.f32 %v216, %v216
        %v221 = vmul.f32 %v217, %v217
        %v222 = vmul.f32 %v218, %v218
        %v223 = vadd.f32 %v219, %v220
        %v224 = vadd.f32 %v223, %v221
        %v225 = vadd.f32 %v224, %v222
        %226 = vadd.xlane.f32.xlu0 %v225
        %v227 = vpop.xlane.xlu0 %226
        %v228 = vrsqrt.pop %v227
        %v229 = vmul.f32 %v227, %v228
        %vm230 = vcmp.eq.f32.partialorder %v227, inf
        %v231 = vsel %vm230, %v227, %v229
        %vm232 = vcmp.eq.f32.partialorder %v227, 0.0
        %v233 = vand.u32 %v227, 2147483648
        %v234 = vsel %vm232, %v233, %v231
        %v235 = vmax.f32 %v234, 1e-12
        %v236 = vrcp.pop %v235
        %v237 = vmul.f32 %v215, %v236
        %v238 = vmul.f32 %v216, %v236
        %v239 = vmul.f32 %v217, %v236
        %v240 = vmul.f32 %v218, %v236
        %241 = vmatprep.subr.mxu0 %v238
        %242 = vmatpush1.xpose.msra.mxu0 %v237
        %243 = vmatprep.subr.mxu0 0.0
        %244 = vmatpush1.xpose.msra.mxu0 0.0
        %245 = vmatprep.subr.mxu0 0.0
        %246 = vmatpush1.xpose.msra.mxu0 0.0
        %247 = vmatprep.subr.mxu0 0.0
        %248 = vmatpush1.xpose.msra.mxu0 0.0
        %249 = vmatprep.subr.mxu0 0.0
        %250 = vmatpush1.xpose.msra.mxu0 0.0
        %251 = vmatprep.subr.mxu0 0.0
        %252 = vmatpush1.xpose.msra.mxu0 0.0
        %253 = vmatprep.subr.mxu0 0.0
        %254 = vmatpush1.xpose.msra.mxu0 0.0
        %255 = vmatprep.subr.mxu0 0.0
        %256 = vmatpush1.xpose.msra.mxu0 0.0
        %257 = vmatprep.subr.mxu0 0.0
        %258 = vmatpush1.xpose.msra.mxu0 0.0
        %259 = vmatprep.subr.mxu0 0.0
        %260 = vmatpush1.xpose.msra.mxu0 0.0
        %261 = vmatprep.subr.mxu0 0.0
        %262 = vmatpush1.xpose.msra.mxu0 0.0
        %263 = vmatprep.subr.mxu0 0.0
        %264 = vmatpush1.xpose.msra.mxu0 0.0
        %265 = vmatprep.subr.mxu0 0.0
        %266 = vmatpush1.xpose.msra.mxu0 0.0
        %267 = vmatprep.subr.mxu0 0.0
        %268 = vmatpush1.xpose.msra.mxu0 0.0
        %269 = vmatprep.subr.mxu0 0.0
        %270 = vmatpush1.xpose.msra.mxu0 0.0
        %271 = vmatprep.subr.mxu0 0.0
        %272 = vmatpush1.xpose.msra.mxu0 0.0
        %273 = vmatprep.subr.mxu0 0.0
        %274 = vmatpush1.xpose.msra.mxu0 0.0
        %275 = vmatprep.subr.mxu0 0.0
        %276 = vmatpush1.xpose.msra.mxu0 0.0
        %277 = vmatprep.subr.mxu0 0.0
        %278 = vmatpush1.xpose.msra.mxu0 0.0
        %279 = vmatprep.subr.mxu0 0.0
        %280 = vmatpush1.xpose.msra.mxu0 0.0
        %281 = vmatprep.subr.mxu0 0.0
        %282 = vmatpush1.xpose.msra.mxu0 0.0
        %283 = vmatprep.subr.mxu0 0.0
        %284 = vmatpush1.xpose.msra.mxu0 0.0
        %285 = vmatprep.subr.mxu0 0.0
        %286 = vmatpush1.xpose.msra.mxu0 0.0
        %287 = vmatprep.subr.mxu0 0.0
        %288 = vmatpush1.xpose.msra.mxu0 0.0
        %289 = vmatprep.subr.mxu0 0.0
        %290 = vmatpush1.xpose.msra.mxu0 0.0
        %291 = vmatprep.subr.mxu0 0.0
        %292 = vmatpush1.xpose.msra.mxu0 0.0
        %293 = vmatprep.subr.mxu0 0.0
        %294 = vmatpush1.xpose.msra.mxu0 0.0
        %295 = vmatprep.subr.mxu0 0.0
        %296 = vmatpush1.xpose.msra.mxu0 0.0
        %297 = vmatprep.subr.mxu0 0.0
        %298 = vmatpush1.xpose.msra.mxu0 0.0
        %299 = vmatprep.subr.mxu0 0.0
        %300 = vmatpush1.xpose.msra.mxu0 0.0
        %301 = vmatprep.subr.mxu0 0.0
        %302 = vmatpush1.xpose.msra.mxu0 0.0
        %303 = vmatprep.subr.mxu0 0.0
        %304 = vmatpush1.xpose.msra.mxu0 0.0
        %305 = vmatprep.mubr.f32.mxu0 %v238
        %306 = vmatmul.mubr.f32.gmra.mrb[0].mxu0 %v237
        %v307 = vpop.f32.mrb[0].mxu0
        %v308 = vadd.f32 0.0, %v307
        %v309 = vpop.f32.mrb[0].mxu0
        %310 = vdwg.mxu0
        %311 = vmatprep.subr.mxu0 %v240
        %312 = vmatpush1.xpose.msra.mxu0 %v239
        %313 = vmatprep.subr.mxu0 0.0
        %314 = vmatpush1.xpose.msra.mxu0 0.0
        %315 = vmatprep.subr.mxu0 0.0
        %316 = vmatpush1.xpose.msra.mxu0 0.0
        %317 = vmatprep.subr.mxu0 0.0
        %318 = vmatpush1.xpose.msra.mxu0 0.0
        %319 = vmatprep.subr.mxu0 0.0
        %320 = vmatpush1.xpose.msra.mxu0 0.0
        %321 = vmatprep.subr.mxu0 0.0
        %322 = vmatpush1.xpose.msra.mxu0 0.0
        %323 = vmatprep.subr.mxu0 0.0
        %324 = vmatpush1.xpose.msra.mxu0 0.0
        %325 = vmatprep.subr.mxu0 0.0
        %326 = vmatpush1.xpose.msra.mxu0 0.0
        %327 = vmatprep.subr.mxu0 0.0
        %328 = vmatpush1.xpose.msra.mxu0 0.0
        %329 = vmatprep.subr.mxu0 0.0
        %330 = vmatpush1.xpose.msra.mxu0 0.0
        %331 = vmatprep.subr.mxu0 0.0
        %332 = vmatpush1.xpose.msra.mxu0 0.0
        %333 = vmatprep.subr.mxu0 0.0
        %334 = vmatpush1.xpose.msra.mxu0 0.0
        %335 = vmatprep.subr.mxu0 0.0
        %336 = vmatpush1.xpose.msra.mxu0 0.0
        %337 = vmatprep.subr.mxu0 0.0
        %338 = vmatpush1.xpose.msra.mxu0 0.0
        %339 = vmatprep.subr.mxu0 0.0
        %340 = vmatpush1.xpose.msra.mxu0 0.0
        %341 = vmatprep.subr.mxu0 0.0
        %342 = vmatpush1.xpose.msra.mxu0 0.0
        %343 = vmatprep.subr.mxu0 0.0
        %344 = vmatpush1.xpose.msra.mxu0 0.0
        %345 = vmatprep.subr.mxu0 0.0
        %346 = vmatpush1.xpose.msra.mxu0 0.0
        %347 = vmatprep.subr.mxu0 0.0
        %348 = vmatpush1.xpose.msra.mxu0 0.0
        %349 = vmatprep.subr.mxu0 0.0
        %350 = vmatpush1.xpose.msra.mxu0 0.0
        %351 = vmatprep.subr.mxu0 0.0
        %352 = vmatpush1.xpose.msra.mxu0 0.0
        %353 = vmatprep.subr.mxu0 0.0
        %354 = vmatpush1.xpose.msra.mxu0 0.0
        %355 = vmatprep.subr.mxu0 0.0
        %356 = vmatpush1.xpose.msra.mxu0 0.0
        %357 = vmatprep.subr.mxu0 0.0
        %358 = vmatpush1.xpose.msra.mxu0 0.0
        %359 = vmatprep.subr.mxu0 0.0
        %360 = vmatpush1.xpose.msra.mxu0 0.0
        %361 = vmatprep.subr.mxu0 0.0
        %362 = vmatpush1.xpose.msra.mxu0 0.0
        %363 = vmatprep.subr.mxu0 0.0
        %364 = vmatpush1.xpose.msra.mxu0 0.0
        %365 = vmatprep.subr.mxu0 0.0
        %366 = vmatpush1.xpose.msra.mxu0 0.0
        %367 = vmatprep.subr.mxu0 0.0
        %368 = vmatpush1.xpose.msra.mxu0 0.0
        %369 = vmatprep.subr.mxu0 0.0
        %370 = vmatpush1.xpose.msra.mxu0 0.0
        %371 = vmatprep.subr.mxu0 0.0
        %372 = vmatpush1.xpose.msra.mxu0 0.0
        %373 = vmatprep.subr.mxu0 0.0
        %374 = vmatpush1.xpose.msra.mxu0 0.0
        %375 = vmatprep.mubr.f32.mxu0 %v240
        %376 = vmatmul.mubr.f32.gmra.mrb[0].mxu0 %v239
        %v377 = vpop.f32.mrb[0].mxu0
        %v378 = vadd.f32 %v308, %v377
        %v379 = vpop.f32.mrb[0].mxu0
        %380 = vdwg.mxu0
        %v381 = vsub.f32 1.0, %v378
        %vm382 = vcmp.lt.f32.partialorder %v381, 0.6
        %v383 = vsel %vm382, 1, 0
        %v384 = vcvt.s32.f32 %v383
        %vm385 = vcmask 64512
        %v386 = vsel %vm385, %v384, 0.0
        %387 = vadd.xlane.f32.xlu0 %v386
        %v388 = vpop.xlane.xlu0 %387
        %v390 = vsel %vm385, %v384, 0
        %392 = vmatprep.subr.mxu0 %v238
        %393 = vmatpush1.msra.mxu0 %v237
        %394 = vmatprep.subr.mxu0 0.0
        %395 = vmatpush1.msra.mxu0 0.0
        %396 = vmatprep.subr.mxu0 0.0
        %397 = vmatpush1.msra.mxu0 0.0
        %398 = vmatprep.subr.mxu0 0.0
        %399 = vmatpush1.msra.mxu0 0.0
        %400 = vmatprep.subr.mxu0 0.0
        %401 = vmatpush1.msra.mxu0 0.0
        %402 = vmatprep.subr.mxu0 0.0
        %403 = vmatpush1.msra.mxu0 0.0
        %404 = vmatprep.subr.mxu0 0.0
        %405 = vmatpush1.msra.mxu0 0.0
        %406 = vmatprep.subr.mxu0 0.0
        %407 = vmatpush1.msra.mxu0 0.0
        %408 = vmatprep.subr.mxu0 0.0
        %409 = vmatpush1.msra.mxu0 0.0
        %410 = vmatprep.subr.mxu0 0.0
        %411 = vmatpush1.msra.mxu0 0.0
        %412 = vmatprep.subr.mxu0 0.0
        %413 = vmatpush1.msra.mxu0 0.0
        %414 = vmatprep.subr.mxu0 0.0
        %415 = vmatpush1.msra.mxu0 0.0
        %416 = vmatprep.subr.mxu0 0.0
        %417 = vmatpush1.msra.mxu0 0.0
        %418 = vmatprep.subr.mxu0 0.0
        %419 = vmatpush1.msra.mxu0 0.0
        %420 = vmatprep.subr.mxu0 0.0
        %421 = vmatpush1.msra.mxu0 0.0
        %422 = vmatprep.subr.mxu0 0.0
        %423 = vmatpush1.msra.mxu0 0.0
        %424 = vmatprep.subr.mxu0 0.0
        %425 = vmatpush1.msra.mxu0 0.0
        %426 = vmatprep.subr.mxu0 0.0
        %427 = vmatpush1.msra.mxu0 0.0
        %428 = vmatprep.subr.mxu0 0.0
        %429 = vmatpush1.msra.mxu0 0.0
        %430 = vmatprep.subr.mxu0 0.0
        %431 = vmatpush1.msra.mxu0 0.0
        %432 = vmatprep.subr.mxu0 0.0
        %433 = vmatpush1.msra.mxu0 0.0
        %434 = vmatprep.subr.mxu0 0.0
        %435 = vmatpush1.msra.mxu0 0.0
        %436 = vmatprep.subr.mxu0 0.0
        %437 = vmatpush1.msra.mxu0 0.0
        %438 = vmatprep.subr.mxu0 0.0
        %439 = vmatpush1.msra.mxu0 0.0
        %440 = vmatprep.subr.mxu0 0.0
        %441 = vmatpush1.msra.mxu0 0.0
        %442 = vmatprep.subr.mxu0 0.0
        %443 = vmatpush1.msra.mxu0 0.0
        %444 = vmatprep.subr.mxu0 0.0
        %445 = vmatpush1.msra.mxu0 0.0
        %446 = vmatprep.subr.mxu0 0.0
        %447 = vmatpush1.msra.mxu0 0.0
        %448 = vmatprep.subr.mxu0 0.0
        %449 = vmatpush1.msra.mxu0 0.0
        %450 = vmatprep.subr.mxu0 0.0
        %451 = vmatpush1.msra.mxu0 0.0
        %452 = vmatprep.subr.mxu0 0.0
        %453 = vmatpush1.msra.mxu0 0.0
        %454 = vmatprep.subr.mxu0 0.0
        %455 = vmatpush1.msra.mxu0 0.0
        %456 = vmatprep.mubr.f32.mxu0 0.0
        %457 = vmatmul.mubr.f32.gmra.mrb[0].mxu0 %v390
        %v458 = vpop.f32.mrb[0].mxu0
        %v459 = vadd.f32 0.0, %v458
        %v460 = vpop.f32.mrb[0].mxu0
        %v461 = vadd.f32 0.0, %v460
        %462 = vdwg.mxu0
        %463 = vmatprep.subr.mxu0 %v240
        %464 = vmatpush1.msra.mxu0 %v239
        %465 = vmatprep.subr.mxu0 0.0
        %466 = vmatpush1.msra.mxu0 0.0
        %467 = vmatprep.subr.mxu0 0.0
        %468 = vmatpush1.msra.mxu0 0.0
        %469 = vmatprep.subr.mxu0 0.0
        %470 = vmatpush1.msra.mxu0 0.0
        %471 = vmatprep.subr.mxu0 0.0
        %472 = vmatpush1.msra.mxu0 0.0
        %473 = vmatprep.subr.mxu0 0.0
        %474 = vmatpush1.msra.mxu0 0.0
        %475 = vmatprep.subr.mxu0 0.0
        %476 = vmatpush1.msra.mxu0 0.0
        %477 = vmatprep.subr.mxu0 0.0
        %478 = vmatpush1.msra.mxu0 0.0
        %479 = vmatprep.subr.mxu0 0.0
        %480 = vmatpush1.msra.mxu0 0.0
        %481 = vmatprep.subr.mxu0 0.0
        %482 = vmatpush1.msra.mxu0 0.0
        %483 = vmatprep.subr.mxu0 0.0
        %484 = vmatpush1.msra.mxu0 0.0
        %485 = vmatprep.subr.mxu0 0.0
        %486 = vmatpush1.msra.mxu0 0.0
        %487 = vmatprep.subr.mxu0 0.0
        %488 = vmatpush1.msra.mxu0 0.0
        %489 = vmatprep.subr.mxu0 0.0
        %490 = vmatpush1.msra.mxu0 0.0
        %491 = vmatprep.subr.mxu0 0.0
        %492 = vmatpush1.msra.mxu0 0.0
        %493 = vmatprep.subr.mxu0 0.0
        %494 = vmatpush1.msra.mxu0 0.0
        %495 = vmatprep.subr.mxu0 0.0
        %496 = vmatpush1.msra.mxu0 0.0
        %497 = vmatprep.subr.mxu0 0.0
        %498 = vmatpush1.msra.mxu0 0.0
        %499 = vmatprep.subr.mxu0 0.0
        %500 = vmatpush1.msra.mxu0 0.0
        %501 = vmatprep.subr.mxu0 0.0
        %502 = vmatpush1.msra.mxu0 0.0
        %503 = vmatprep.subr.mxu0 0.0
        %504 = vmatpush1.msra.mxu0 0.0
        %505 = vmatprep.subr.mxu0 0.0
        %506 = vmatpush1.msra.mxu0 0.0
        %507 = vmatprep.subr.mxu0 0.0
        %508 = vmatpush1.msra.mxu0 0.0
        %509 = vmatprep.subr.mxu0 0.0
        %510 = vmatpush1.msra.mxu0 0.0
        %511 = vmatprep.subr.mxu0 0.0
        %512 = vmatpush1.msra.mxu0 0.0
        %513 = vmatprep.subr.mxu0 0.0
        %514 = vmatpush1.msra.mxu0 0.0
        %515 = vmatprep.subr.mxu0 0.0
        %516 = vmatpush1.msra.mxu0 0.0
        %517 = vmatprep.subr.mxu0 0.0
        %518 = vmatpush1.msra.mxu0 0.0
        %519 = vmatprep.subr.mxu0 0.0
        %520 = vmatpush1.msra.mxu0 0.0
        %521 = vmatprep.subr.mxu0 0.0
        %522 = vmatpush1.msra.mxu0 0.0
        %523 = vmatprep.subr.mxu0 0.0
        %524 = vmatpush1.msra.mxu0 0.0
        %525 = vmatprep.subr.mxu0 0.0
        %526 = vmatpush1.msra.mxu0 0.0
        %527 = vmatprep.mubr.f32.mxu0 0.0
        %528 = vmatmul.mubr.f32.gmra.mrb[0].mxu0 %v390
        %v529 = vpop.f32.mrb[0].mxu0
        %v530 = vadd.f32 0.0, %v529
        %v531 = vpop.f32.mrb[0].mxu0
        %v532 = vadd.f32 0.0, %v531
        %533 = vdwg.mxu0
        %v534 = vrcp.pop %v388
        %v535 = vmul.f32 %v459, %v534
        %v536 = vmul.f32 %v461, %v534
        %v537 = vmul.f32 %v530, %v534
        %v538 = vmul.f32 %v532, %v534
        %v539 = vpack.c.bf16 %v535, %v535
        %v540 = vpack.c.bf16 %v536, %v536
        %v541 = vpack.c.bf16 %v537, %v537
        %v542 = vpack.c.bf16 %v538, %v538
        %v547 = vunpack.c.l.b16 %v539
        %v548 = vunpack.c.l.b16 %v540
        %v549 = vunpack.c.l.b16 %v541
        %v550 = vunpack.c.l.b16 %v542
        %v551 = vpack.c.b16 %v548, %v547
        %v552 = vpack.c.b16 %v550, %v549
        %555 = vst [vmem:[#allocation2] sm:$0xff] %v551
        %556 = vst [vmem:[#allocation2 + $0x8] sm:$0xff] %v552
        %vm557 = vcmask 7168
        %558 = vst.msk [vmem:[#allocation3] sm:$0xff] %vm557, inf
        %559 = vst.msk [vmem:[#allocation4] sm:$0xff] %vm557, 0
      $region32: #{tracker_forward.1} parent=27 // pred_fallthru
        _
      %v560 = vld [vmem:[#allocation2] sm:$0xff]
      %v561 = vld [vmem:[#allocation2 + $0x8] sm:$0xff]
      %v562 = vld [vmem:[%s199] sm:$0xff]
      %v563 = vld [vmem:[%s199 + $0x8] sm:$0xff]
      %v564 = vld [vmem:[%s199 + $0x10] sm:$0xff]
      %v565 = vld [vmem:[%s199 + $0x18] sm:$0xff]
      %v566 = vld [vmem:[%s199 + $0x20] sm:$0xff]
      %v567 = vld [vmem:[%s199 + $0x28] sm:$0xff]
      %v568 = vld [vmem:[%s199 + $0x30] sm:$0xff]
      %v569 = vld [vmem:[%s199 + $0x38] sm:$0xff]
      %v570 = vld [vmem:[%s199 + $0x40] sm:$0xff]
      %v571 = vld [vmem:[%s199 + $0x48] sm:$0xff]
      %v572 = vld [vmem:[%s199 + $0x50] sm:$0xff]
      %v573 = vld [vmem:[%s199 + $0x58] sm:$0xff]
      %v574 = vld [vmem:[%s199 + $0x60] sm:$0xff]
      %v575 = vld [vmem:[%s199 + $0x68] sm:$0xff]
      %v576 = vld [vmem:[%s199 + $0x70] sm:$0xff]
      %v577 = vld [vmem:[%s199 + $0x78] sm:$0xff]
      %v578 = vld [vmem:[%s199 + $0x80] sm:$0xff]
      %v579 = vld [vmem:[%s199 + $0x88] sm:$0xff]
      %v580 = vld [vmem:[%s199 + $0x90] sm:$0xff]
      %v581 = vld [vmem:[%s199 + $0x98] sm:$0xff]
      %v582 = vld [vmem:[%s199 + $0xa0] sm:$0xff]
      %v583 = vld [vmem:[%s199 + $0xa8] sm:$0xff]
      %v584 = vld [vmem:[%s199 + $0xb0] sm:$0xff]
      %v585 = vld [vmem:[%s199 + $0xb8] sm:$0xff]
      %v586 = vld [vmem:[%s199 + $0xc0] sm:$0xff]
      %v587 = vld [vmem:[%s199 + $0xc8] sm:$0xff]
      %v588 = vld [vmem:[%s199 + $0xd0] sm:$0xff]
      %v589 = vld [vmem:[%s199 + $0xd8] sm:$0xff]
      %v590 = vld [vmem:[%s199 + $0xe0] sm:$0xff]
      %v591 = vld [vmem:[%s199 + $0xe8] sm:$0xff]
      %v592 = vld [vmem:[%s199 + $0xf0] sm:$0xff]
      %v593 = vld [vmem:[%s199 + $0xf8] sm:$0xff]
      %v594 = vld [vmem:[%s199 + $0x100] sm:$0xff]
      %v595 = vld [vmem:[%s199 + $0x108] sm:$0xff]
      %v596 = vld [vmem:[%s199 + $0x110] sm:$0xff]
      %v597 = vld [vmem:[%s199 + $0x118] sm:$0xff]
      %v598 = vld [vmem:[%s199 + $0x120] sm:$0xff]
      %v599 = vld [vmem:[%s199 + $0x128] sm:$0xff]
      %v600 = vld [vmem:[%s199 + $0x130] sm:$0xff]
      %v601 = vld [vmem:[%s199 + $0x138] sm:$0xff]
      %v602 = vld [vmem:[%s199 + $0x140] sm:$0xff]
      %v603 = vld [vmem:[%s199 + $0x148] sm:$0xff]
      %v604 = vld [vmem:[%s199 + $0x150] sm:$0xff]
      %v605 = vld [vmem:[%s199 + $0x158] sm:$0xff]
      %v606 = vld [vmem:[%s199 + $0x160] sm:$0xff]
      %v607 = vld [vmem:[%s199 + $0x168] sm:$0xff]
      %v608 = vld [vmem:[%s199 + $0x170] sm:$0xff]
      %v609 = vld [vmem:[%s199 + $0x178] sm:$0xff]
      %v610 = vld [vmem:[%s199 + $0x180] sm:$0xff]
      %v611 = vld [vmem:[%s199 + $0x188] sm:$0xff]
      %v612 = vld [vmem:[%s199 + $0x190] sm:$0xff]
      %v613 = vld [vmem:[%s199 + $0x198] sm:$0xff]
      %v614 = vld [vmem:[%s199 + $0x1a0] sm:$0xff]
      %v615 = vld [vmem:[%s199 + $0x1a8] sm:$0xff]
      %v616 = vld [vmem:[%s199 + $0x1b0] sm:$0xff]
      %v617 = vld [vmem:[%s199 + $0x1b8] sm:$0xff]
      %v618 = vld [vmem:[%s199 + $0x1c0] sm:$0xff]
      %v619 = vld [vmem:[%s199 + $0x1c8] sm:$0xff]
      %v620 = vld [vmem:[%s199 + $0x1d0] sm:$0xff]
      %v621 = vld [vmem:[%s199 + $0x1d8] sm:$0xff]
      %v622 = vld [vmem:[%s199 + $0x1e0] sm:$0xff]
      %v623 = vld [vmem:[%s199 + $0x1e8] sm:$0xff]
      %v624 = vld [vmem:[%s199 + $0x1f0] sm:$0xff]
      %v625 = vld [vmem:[%s199 + $0x1f8] sm:$0xff]
      %v626 = vld [vmem:[%s199 + $0x200] sm:$0xff]
      %v627 = vld [vmem:[%s199 + $0x208] sm:$0xff]
      %v628 = vld [vmem:[%s199 + $0x210] sm:$0xff]
      %v629 = vld [vmem:[%s199 + $0x218] sm:$0xff]
      %v630 = vld [vmem:[%s199 + $0x220] sm:$0xff]
      %v631 = vld [vmem:[%s199 + $0x228] sm:$0xff]
      %v632 = vld [vmem:[%s199 + $0x230] sm:$0xff]
      %v633 = vld [vmem:[%s199 + $0x238] sm:$0xff]
      %v634 = vld [vmem:[%s199 + $0x240] sm:$0xff]
      %v635 = vld [vmem:[%s199 + $0x248] sm:$0xff]
      %v636 = vld [vmem:[%s199 + $0x250] sm:$0xff]
      %v637 = vld [vmem:[%s199 + $0x258] sm:$0xff]
      %v638 = vld [vmem:[%s199 + $0x260] sm:$0xff]
      %v639 = vld [vmem:[%s199 + $0x268] sm:$0xff]
      %v640 = vld [vmem:[%s199 + $0x270] sm:$0xff]
      %v641 = vld [vmem:[%s199 + $0x278] sm:$0xff]
      %v642 = vld [vmem:[%s199 + $0x280] sm:$0xff]
      %v643 = vld [vmem:[%s199 + $0x288] sm:$0xff]
      %v644 = vld [vmem:[%s199 + $0x290] sm:$0xff]
      %v645 = vld [vmem:[%s199 + $0x298] sm:$0xff]
      %v646 = vld [vmem:[%s199 + $0x2a0] sm:$0xff]
      %v647 = vld [vmem:[%s199 + $0x2a8] sm:$0xff]
      %v648 = vld [vmem:[%s199 + $0x2b0] sm:$0xff]
      %v649 = vld [vmem:[%s199 + $0x2b8] sm:$0xff]
      %v650 = vld [vmem:[%s199 + $0x2c0] sm:$0xff]
      %v651 = vld [vmem:[%s199 + $0x2c8] sm:$0xff]
      %v652 = vld [vmem:[%s199 + $0x2d0] sm:$0xff]
      %v653 = vld [vmem:[%s199 + $0x2d8] sm:$0xff]
      %v654 = vld [vmem:[%s199 + $0x2e0] sm:$0xff]
      %v655 = vld [vmem:[%s199 + $0x2e8] sm:$0xff]
      %v656 = vld [vmem:[%s199 + $0x2f0] sm:$0xff]
      %v657 = vld [vmem:[%s199 + $0x2f8] sm:$0xff]
      %v658 = vld [vmem:[%s199 + $0x300] sm:$0xff]
      %v659 = vld [vmem:[%s199 + $0x308] sm:$0xff]
      %v660 = vld [vmem:[%s199 + $0x310] sm:$0xff]
      %v661 = vld [vmem:[%s199 + $0x318] sm:$0xff]
      %v662 = vld [vmem:[%s199 + $0x320] sm:$0xff]
      %v663 = vld [vmem:[%s199 + $0x328] sm:$0xff]
      %v664 = vld [vmem:[%s199 + $0x330] sm:$0xff]
      %v665 = vld [vmem:[%s199 + $0x338] sm:$0xff]
      %v666 = vld [vmem:[%s199 + $0x340] sm:$0xff]
      %v667 = vld [vmem:[%s199 + $0x348] sm:$0xff]
      %v668 = vld [vmem:[%s199 + $0x350] sm:$0xff]
      %v669 = vld [vmem:[%s199 + $0x358] sm:$0xff]
      %v670 = vld [vmem:[%s199 + $0x360] sm:$0xff]
      %v671 = vld [vmem:[%s199 + $0x368] sm:$0xff]
      %v672 = vld [vmem:[%s199 + $0x370] sm:$0xff]
      %v673 = vld [vmem:[%s199 + $0x378] sm:$0xff]
      %v674 = vld [vmem:[%s199 + $0x380] sm:$0xff]
      %v675 = vld [vmem:[%s199 + $0x388] sm:$0xff]
      %v676 = vld [vmem:[%s199 + $0x390] sm:$0xff]
      %v677 = vld [vmem:[%s199 + $0x398] sm:$0xff]
      %v678 = vld [vmem:[%s199 + $0x3a0] sm:$0xff]
      %v679 = vld [vmem:[%s199 + $0x3a8] sm:$0xff]
      %v680 = vld [vmem:[%s199 + $0x3b0] sm:$0xff]
      %v681 = vld [vmem:[%s199 + $0x3b8] sm:$0xff]
      %v682 = vld [vmem:[%s199 + $0x3c0] sm:$0xff]
      %v683 = vld [vmem:[%s199 + $0x3c8] sm:$0xff]
      %v684 = vld [vmem:[%s199 + $0x3d0] sm:$0xff]
      %v685 = vld [vmem:[%s199 + $0x3d8] sm:$0xff]
      %v686 = vld [vmem:[%s199 + $0x3e0] sm:$0xff]
      %v687 = vld [vmem:[%s199 + $0x3e8] sm:$0xff]
      %v688 = vld [vmem:[%s199 + $0x3f0] sm:$0xff]
      %v689 = vld [vmem:[%s199 + $0x3f8] sm:$0xff]
      %v690 = vld [vmem:[%s199 + $0x400] sm:$0xff]
      %v691 = vld [vmem:[%s199 + $0x408] sm:$0xff]
      %v692 = vld [vmem:[%s199 + $0x410] sm:$0xff]
      %v693 = vld [vmem:[%s199 + $0x418] sm:$0xff]
      %v694 = vld [vmem:[%s199 + $0x420] sm:$0xff]
      %v695 = vld [vmem:[%s199 + $0x428] sm:$0xff]
      %v696 = vld [vmem:[%s199 + $0x430] sm:$0xff]
      %v697 = vld [vmem:[%s199 + $0x438] sm:$0xff]
      %v698 = vld [vmem:[%s199 + $0x440] sm:$0xff]
      %v699 = vld [vmem:[%s199 + $0x448] sm:$0xff]
      %v700 = vld [vmem:[%s199 + $0x450] sm:$0xff]
      %v701 = vld [vmem:[%s199 + $0x458] sm:$0xff]
      %v702 = vld [vmem:[%s199 + $0x460] sm:$0xff]
      %v703 = vld [vmem:[%s199 + $0x468] sm:$0xff]
      %v704 = vld [vmem:[%s199 + $0x470] sm:$0xff]
      %v705 = vld [vmem:[%s199 + $0x478] sm:$0xff]
      %v706 = vld [vmem:[%s199 + $0x480] sm:$0xff]
      %v707 = vld [vmem:[%s199 + $0x488] sm:$0xff]
      %v708 = vld [vmem:[%s199 + $0x490] sm:$0xff]
      %v709 = vld [vmem:[%s199 + $0x498] sm:$0xff]
      %v710 = vld [vmem:[%s199 + $0x4a0] sm:$0xff]
      %v711 = vld [vmem:[%s199 + $0x4a8] sm:$0xff]
      %v712 = vld [vmem:[%s199 + $0x4b0] sm:$0xff]
      %v713 = vld [vmem:[%s199 + $0x4b8] sm:$0xff]
      %v714 = vld [vmem:[%s199 + $0x4c0] sm:$0xff]
      %v715 = vld [vmem:[%s199 + $0x4c8] sm:$0xff]
      %v716 = vld [vmem:[%s199 + $0x4d0] sm:$0xff]
      %v717 = vld [vmem:[%s199 + $0x4d8] sm:$0xff]
      %v718 = vld [vmem:[%s199 + $0x4e0] sm:$0xff]
      %v719 = vld [vmem:[%s199 + $0x4e8] sm:$0xff]
      %v720 = vld [vmem:[%s199 + $0x4f0] sm:$0xff]
      %v721 = vld [vmem:[%s199 + $0x4f8] sm:$0xff]
      %v722 = vld [vmem:[%s199 + $0x500] sm:$0xff]
      %v723 = vld [vmem:[%s199 + $0x508] sm:$0xff]
      %v724 = vld [vmem:[%s199 + $0x510] sm:$0xff]
      %v725 = vld [vmem:[%s199 + $0x518] sm:$0xff]
      %v726 = vld [vmem:[%s199 + $0x520] sm:$0xff]
      %v727 = vld [vmem:[%s199 + $0x528] sm:$0xff]
      %v728 = vld [vmem:[%s199 + $0x530] sm:$0xff]
      %v729 = vld [vmem:[%s199 + $0x538] sm:$0xff]
      %v730 = vld [vmem:[%s199 + $0x540] sm:$0xff]
      %v731 = vld [vmem:[%s199 + $0x548] sm:$0xff]
      %v732 = vld [vmem:[%s199 + $0x550] sm:$0xff]
      %v733 = vld [vmem:[%s199 + $0x558] sm:$0xff]
      %v734 = vld [vmem:[%s199 + $0x560] sm:$0xff]
      %v735 = vld [vmem:[%s199 + $0x568] sm:$0xff]
      %v736 = vld [vmem:[%s199 + $0x570] sm:$0xff]
      %v737 = vld [vmem:[%s199 + $0x578] sm:$0xff]
      %v738 = vld [vmem:[%s199 + $0x580] sm:$0xff]
      %v739 = vld [vmem:[%s199 + $0x588] sm:$0xff]
      %v740 = vld [vmem:[%s199 + $0x590] sm:$0xff]
      %v741 = vld [vmem:[%s199 + $0x598] sm:$0xff]
      %v742 = vld [vmem:[%s199 + $0x5a0] sm:$0xff]
      %v743 = vld [vmem:[%s199 + $0x5a8] sm:$0xff]
      %v744 = vld [vmem:[%s199 + $0x5b0] sm:$0xff]
      %v745 = vld [vmem:[%s199 + $0x5b8] sm:$0xff]
      %v746 = vld [vmem:[%s199 + $0x5c0] sm:$0xff]
      %v747 = vld [vmem:[%s199 + $0x5c8] sm:$0xff]
      %v748 = vld [vmem:[%s199 + $0x5d0] sm:$0xff]
      %v749 = vld [vmem:[%s199 + $0x5d8] sm:$0xff]
      %v750 = vld [vmem:[%s199 + $0x5e0] sm:$0xff]
      %v751 = vld [vmem:[%s199 + $0x5e8] sm:$0xff]
      %v752 = vld [vmem:[%s199 + $0x5f0] sm:$0xff]
      %v753 = vld [vmem:[%s199 + $0x5f8] sm:$0xff]
      %v754 = vld [vmem:[%s199 + $0x600] sm:$0xff]
      %v755 = vld [vmem:[%s199 + $0x608] sm:$0xff]
      %v756 = vld [vmem:[%s199 + $0x610] sm:$0xff]
      %v757 = vld [vmem:[%s199 + $0x618] sm:$0xff]
      %v758 = vld [vmem:[%s199 + $0x620] sm:$0xff]
      %v759 = vld [vmem:[%s199 + $0x628] sm:$0xff]
      %v760 = vld [vmem:[%s199 + $0x630] sm:$0xff]
      %v761 = vld [vmem:[%s199 + $0x638] sm:$0xff]
      %v762 = vld [vmem:[%s199 + $0x640] sm:$0xff]
      %v763 = vld [vmem:[%s199 + $0x648] sm:$0xff]
      %v764 = vld [vmem:[%s199 + $0x650] sm:$0xff]
      %v765 = vld [vmem:[%s199 + $0x658] sm:$0xff]
      %v766 = vld [vmem:[%s199 + $0x660] sm:$0xff]
      %v767 = vld [vmem:[%s199 + $0x668] sm:$0xff]
      %v768 = vld [vmem:[%s199 + $0x670] sm:$0xff]
      %v769 = vld [vmem:[%s199 + $0x678] sm:$0xff]
      %v770 = vld [vmem:[%s199 + $0x680] sm:$0xff]
      %v771 = vld [vmem:[%s199 + $0x688] sm:$0xff]
      %v772 = vld [vmem:[%s199 + $0x690] sm:$0xff]
      %v773 = vld [vmem:[%s199 + $0x698] sm:$0xff]
      %v774 = vld [vmem:[%s199 + $0x6a0] sm:$0xff]
      %v775 = vld [vmem:[%s199 + $0x6a8] sm:$0xff]
      %v776 = vld [vmem:[%s199 + $0x6b0] sm:$0xff]
      %v777 = vld [vmem:[%s199 + $0x6b8] sm:$0xff]
      %v778 = vld [vmem:[%s199 + $0x6c0] sm:$0xff]
      %v779 = vld [vmem:[%s199 + $0x6c8] sm:$0xff]
      %v780 = vld [vmem:[%s199 + $0x6d0] sm:$0xff]
      %v781 = vld [vmem:[%s199 + $0x6d8] sm:$0xff]
      %v782 = vld [vmem:[%s199 + $0x6e0] sm:$0xff]
      %v783 = vld [vmem:[%s199 + $0x6e8] sm:$0xff]
      %v784 = vld [vmem:[%s199 + $0x6f0] sm:$0xff]
      %v785 = vld [vmem:[%s199 + $0x6f8] sm:$0xff]
      %v786 = vld [vmem:[%s199 + $0x700] sm:$0xff]
      %v787 = vld [vmem:[%s199 + $0x708] sm:$0xff]
      %v788 = vld [vmem:[%s199 + $0x710] sm:$0xff]
      %v789 = vld [vmem:[%s199 + $0x718] sm:$0xff]
      %v790 = vld [vmem:[%s199 + $0x720] sm:$0xff]
      %v791 = vld [vmem:[%s199 + $0x728] sm:$0xff]
      %v792 = vld [vmem:[%s199 + $0x730] sm:$0xff]
      %v793 = vld [vmem:[%s199 + $0x738] sm:$0xff]
      %v794 = vld [vmem:[%s199 + $0x740] sm:$0xff]
      %v795 = vld [vmem:[%s199 + $0x748] sm:$0xff]
      %v796 = vld [vmem:[%s199 + $0x750] sm:$0xff]
      %v797 = vld [vmem:[%s199 + $0x758] sm:$0xff]
      %v798 = vld [vmem:[%s199 + $0x760] sm:$0xff]
      %v799 = vld [vmem:[%s199 + $0x768] sm:$0xff]
      %v800 = vld [vmem:[%s199 + $0x770] sm:$0xff]
      %v801 = vld [vmem:[%s199 + $0x778] sm:$0xff]
      %v802 = vld [vmem:[%s199 + $0x780] sm:$0xff]
      %v803 = vld [vmem:[%s199 + $0x788] sm:$0xff]
      %v804 = vld [vmem:[%s199 + $0x790] sm:$0xff]
      %v805 = vld [vmem:[%s199 + $0x798] sm:$0xff]
      %v806 = vld [vmem:[%s199 + $0x7a0] sm:$0xff]
      %v807 = vld [vmem:[%s199 + $0x7a8] sm:$0xff]
      %v808 = vld [vmem:[%s199 + $0x7b0] sm:$0xff]
      %v809 = vld [vmem:[%s199 + $0x7b8] sm:$0xff]
      %v810 = vld [vmem:[%s199 + $0x7c0] sm:$0xff]
      %v811 = vld [vmem:[%s199 + $0x7c8] sm:$0xff]
      %v812 = vld [vmem:[%s199 + $0x7d0] sm:$0xff]
      %v813 = vld [vmem:[%s199 + $0x7d8] sm:$0xff]
      %v814 = vld [vmem:[%s199 + $0x7e0] sm:$0xff]
      %v815 = vld [vmem:[%s199 + $0x7e8] sm:$0xff]
      %v816 = vld [vmem:[%s199 + $0x7f0] sm:$0xff]
      %v817 = vld [vmem:[%s199 + $0x7f8] sm:$0xff]
      %v820 = vunpack.c.l.b16 %v560
      %v821 = vunpack.c.h.b16 %v560
      %v822 = vunpack.c.l.b16 %v561
      %v823 = vunpack.c.h.b16 %v561
      %v824 = vpack.c.b16 %v820, %v820
      %v825 = vpack.c.b16 %v821, %v821
      %v826 = vpack.c.b16 %v822, %v822
      %v827 = vpack.c.b16 %v823, %v823
      %v1088 = vunpack.c.l.b16 %v562
      %v1089 = vunpack.c.h.b16 %v562
      %v1090 = vunpack.c.l.b16 %v563
      %v1091 = vunpack.c.h.b16 %v563
      %v1092 = vunpack.c.l.b16 %v564
      %v1093 = vunpack.c.h.b16 %v564
      %v1094 = vunpack.c.l.b16 %v565
      %v1095 = vunpack.c.h.b16 %v565
      %v1096 = vunpack.c.l.b16 %v566
      %v1097 = vunpack.c.h.b16 %v566
      %v1098 = vunpack.c.l.b16 %v567
      %v1099 = vunpack.c.h.b16 %v567
      %v1100 = vunpack.c.l.b16 %v568
      %v1101 = vunpack.c.h.b16 %v568
      %v1102 = vunpack.c.l.b16 %v569
      %v1103 = vunpack.c.h.b16 %v569
      %v1104 = vunpack.c.l.b16 %v570
      %v1105 = vunpack.c.h.b16 %v570
      %v1106 = vunpack.c.l.b16 %v571
      %v1107 = vunpack.c.h.b16 %v571
      %v1108 = vunpack.c.l.b16 %v572
      %v1109 = vunpack.c.h.b16 %v572
      %v1110 = vunpack.c.l.b16 %v573
      %v1111 = vunpack.c.h.b16 %v573
      %v1112 = vunpack.c.l.b16 %v574
      %v1113 = vunpack.c.h.b16 %v574
      %v1114 = vunpack.c.l.b16 %v575
      %v1115 = vunpack.c.h.b16 %v575
      %v1116 = vunpack.c.l.b16 %v576
      %v1117 = vunpack.c.h.b16 %v576
      %v1118 = vunpack.c.l.b16 %v577
      %v1119 = vunpack.c.h.b16 %v577
      %v1120 = vunpack.c.l.b16 %v578
      %v1121 = vunpack.c.h.b16 %v578
      %v1122 = vunpack.c.l.b16 %v579
      %v1123 = vunpack.c.h.b16 %v579
      %v1124 = vunpack.c.l.b16 %v580
      %v1125 = vunpack.c.h.b16 %v580
      %v1126 = vunpack.c.l.b16 %v581
      %v1127 = vunpack.c.h.b16 %v581
      %v1128 = vunpack.c.l.b16 %v582
      %v1129 = vunpack.c.h.b16 %v582
      %v1130 = vunpack.c.l.b16 %v583
      %v1131 = vunpack.c.h.b16 %v583
      %v1132 = vunpack.c.l.b16 %v584
      %v1133 = vunpack.c.h.b16 %v584
      %v1134 = vunpack.c.l.b16 %v585
      %v1135 = vunpack.c.h.b16 %v585
      %v1136 = vunpack.c.l.b16 %v586
      %v1137 = vunpack.c.h.b16 %v586
      %v1138 = vunpack.c.l.b16 %v587
      %v1139 = vunpack.c.h.b16 %v587
      %v1140 = vunpack.c.l.b16 %v588
      %v1141 = vunpack.c.h.b16 %v588
      %v1142 = vunpack.c.l.b16 %v589
      %v1143 = vunpack.c.h.b16 %v589
      %v1144 = vunpack.c.l.b16 %v590
      %v1145 = vunpack.c.h.b16 %v590
      %v1146 = vunpack.c.l.b16 %v591
      %v1147 = vunpack.c.h.b16 %v591
      %v1148 = vunpack.c.l.b16 %v592
      %v1149 = vunpack.c.h.b16 %v592
      %v1150 = vunpack.c.l.b16 %v593
      %v1151 = vunpack.c.h.b16 %v593
      %v1152 = vunpack.c.l.b16 %v594
      %v1153 = vunpack.c.h.b16 %v594
      %v1154 = vunpack.c.l.b16 %v595
      %v1155 = vunpack.c.h.b16 %v595
      %v1156 = vunpack.c.l.b16 %v596
      %v1157 = vunpack.c.h.b16 %v596
      %v1158 = vunpack.c.l.b16 %v597
      %v1159 = vunpack.c.h.b16 %v597
      %v1160 = vunpack.c.l.b16 %v598
      %v1161 = vunpack.c.h.b16 %v598
      %v1162 = vunpack.c.l.b16 %v599
      %v1163 = vunpack.c.h.b16 %v599
      %v1164 = vunpack.c.l.b16 %v600
      %v1165 = vunpack.c.h.b16 %v600
      %v1166 = vunpack.c.l.b16 %v601
      %v1167 = vunpack.c.h.b16 %v601
      %v1168 = vunpack.c.l.b16 %v602
      %v1169 = vunpack.c.h.b16 %v602
      %v1170 = vunpack.c.l.b16 %v603
      %v1171 = vunpack.c.h.b16 %v603
      %v1172 = vunpack.c.l.b16 %v604
      %v1173 = vunpack.c.h.b16 %v604
      %v1174 = vunpack.c.l.b16 %v605
      %v1175 = vunpack.c.h.b16 %v605
      %v1176 = vunpack.c.l.b16 %v606
      %v1177 = vunpack.c.h.b16 %v606
      %v1178 = vunpack.c.l.b16 %v607
      %v1179 = vunpack.c.h.b16 %v607
      %v1180 = vunpack.c.l.b16 %v608
      %v1181 = vunpack.c.h.b16 %v608
      %v1182 = vunpack.c.l.b16 %v609
      %v1183 = vunpack.c.h.b16 %v609
      %v1184 = vunpack.c.l.b16 %v610
      %v1185 = vunpack.c.h.b16 %v610
      %v1186 = vunpack.c.l.b16 %v611
      %v1187 = vunpack.c.h.b16 %v611
      %v1188 = vunpack.c.l.b16 %v612
      %v1189 = vunpack.c.h.b16 %v612
      %v1190 = vunpack.c.l.b16 %v613
      %v1191 = vunpack.c.h.b16 %v613
      %v1192 = vunpack.c.l.b16 %v614
      %v1193 = vunpack.c.h.b16 %v614
      %v1194 = vunpack.c.l.b16 %v615
      %v1195 = vunpack.c.h.b16 %v615
      %v1196 = vunpack.c.l.b16 %v616
      %v1197 = vunpack.c.h.b16 %v616
      %v1198 = vunpack.c.l.b16 %v617
      %v1199 = vunpack.c.h.b16 %v617
      %v1200 = vunpack.c.l.b16 %v618
      %v1201 = vunpack.c.h.b16 %v618
      %v1202 = vunpack.c.l.b16 %v619
      %v1203 = vunpack.c.h.b16 %v619
      %v1204 = vunpack.c.l.b16 %v620
      %v1205 = vunpack.c.h.b16 %v620
      %v1206 = vunpack.c.l.b16 %v621
      %v1207 = vunpack.c.h.b16 %v621
      %v1208 = vunpack.c.l.b16 %v622
      %v1209 = vunpack.c.h.b16 %v622
      %v1210 = vunpack.c.l.b16 %v623
      %v1211 = vunpack.c.h.b16 %v623
      %v1212 = vunpack.c.l.b16 %v624
      %v1213 = vunpack.c.h.b16 %v624
      %v1214 = vunpack.c.l.b16 %v625
      %v1215 = vunpack.c.h.b16 %v625
      %v1216 = vunpack.c.l.b16 %v626
      %v1217 = vunpack.c.h.b16 %v626
      %v1218 = vunpack.c.l.b16 %v627
      %v1219 = vunpack.c.h.b16 %v627
      %v1220 = vunpack.c.l.b16 %v628
      %v1221 = vunpack.c.h.b16 %v628
      %v1222 = vunpack.c.l.b16 %v629
      %v1223 = vunpack.c.h.b16 %v629
      %v1224 = vunpack.c.l.b16 %v630
      %v1225 = vunpack.c.h.b16 %v630
      %v1226 = vunpack.c.l.b16 %v631
      %v1227 = vunpack.c.h.b16 %v631
      %v1228 = vunpack.c.l.b16 %v632
      %v1229 = vunpack.c.h.b16 %v632
      %v1230 = vunpack.c.l.b16 %v633
      %v1231 = vunpack.c.h.b16 %v633
      %v1232 = vunpack.c.l.b16 %v634
      %v1233 = vunpack.c.h.b16 %v634
      %v1234 = vunpack.c.l.b16 %v635
      %v1235 = vunpack.c.h.b16 %v635
      %v1236 = vunpack.c.l.b16 %v636
      %v1237 = vunpack.c.h.b16 %v636
      %v1238 = vunpack.c.l.b16 %v637
      %v1239 = vunpack.c.h.b16 %v637
      %v1240 = vunpack.c.l.b16 %v638
      %v1241 = vunpack.c.h.b16 %v638
      %v1242 = vunpack.c.l.b16 %v639
      %v1243 = vunpack.c.h.b16 %v639
      %v1244 = vunpack.c.l.b16 %v640
      %v1245 = vunpack.c.h.b16 %v640
      %v1246 = vunpack.c.l.b16 %v641
      %v1247 = vunpack.c.h.b16 %v641
      %v1248 = vunpack.c.l.b16 %v642
      %v1249 = vunpack.c.h.b16 %v642
      %v1250 = vunpack.c.l.b16 %v643
      %v1251 = vunpack.c.h.b16 %v643
      %v1252 = vunpack.c.l.b16 %v644
      %v1253 = vunpack.c.h.b16 %v644
      %v1254 = vunpack.c.l.b16 %v645
      %v1255 = vunpack.c.h.b16 %v645
      %v1256 = vunpack.c.l.b16 %v646
      %v1257 = vunpack.c.h.b16 %v646
      %v1258 = vunpack.c.l.b16 %v647
      %v1259 = vunpack.c.h.b16 %v647
      %v1260 = vunpack.c.l.b16 %v648
      %v1261 = vunpack.c.h.b16 %v648
      %v1262 = vunpack.c.l.b16 %v649
      %v1263 = vunpack.c.h.b16 %v649
      %v1264 = vunpack.c.l.b16 %v650
      %v1265 = vunpack.c.h.b16 %v650
      %v1266 = vunpack.c.l.b16 %v651
      %v1267 = vunpack.c.h.b16 %v651
      %v1268 = vunpack.c.l.b16 %v652
      %v1269 = vunpack.c.h.b16 %v652
      %v1270 = vunpack.c.l.b16 %v653
      %v1271 = vunpack.c.h.b16 %v653
      %v1272 = vunpack.c.l.b16 %v654
      %v1273 = vunpack.c.h.b16 %v654
      %v1274 = vunpack.c.l.b16 %v655
      %v1275 = vunpack.c.h.b16 %v655
      %v1276 = vunpack.c.l.b16 %v656
      %v1277 = vunpack.c.h.b16 %v656
      %v1278 = vunpack.c.l.b16 %v657
      %v1279 = vunpack.c.h.b16 %v657
      %v1280 = vunpack.c.l.b16 %v658
      %v1281 = vunpack.c.h.b16 %v658
      %v1282 = vunpack.c.l.b16 %v659
      %v1283 = vunpack.c.h.b16 %v659
      %v1284 = vunpack.c.l.b16 %v660
      %v1285 = vunpack.c.h.b16 %v660
      %v1286 = vunpack.c.l.b16 %v661
      %v1287 = vunpack.c.h.b16 %v661
      %v1288 = vunpack.c.l.b16 %v662
      %v1289 = vunpack.c.h.b16 %v662
      %v1290 = vunpack.c.l.b16 %v663
      %v1291 = vunpack.c.h.b16 %v663
      %v1292 = vunpack.c.l.b16 %v664
      %v1293 = vunpack.c.h.b16 %v664
      %v1294 = vunpack.c.l.b16 %v665
      %v1295 = vunpack.c.h.b16 %v665
      %v1296 = vunpack.c.l.b16 %v666
      %v1297 = vunpack.c.h.b16 %v666
      %v1298 = vunpack.c.l.b16 %v667
      %v1299 = vunpack.c.h.b16 %v667
      %v1300 = vunpack.c.l.b16 %v668
      %v1301 = vunpack.c.h.b16 %v668
      %v1302 = vunpack.c.l.b16 %v669
      %v1303 = vunpack.c.h.b16 %v669
      %v1304 = vunpack.c.l.b16 %v670
      %v1305 = vunpack.c.h.b16 %v670
      %v1306 = vunpack.c.l.b16 %v671
      %v1307 = vunpack.c.h.b16 %v671
      %v1308 = vunpack.c.l.b16 %v672
      %v1309 = vunpack.c.h.b16 %v672
      %v1310 = vunpack.c.l.b16 %v673
      %v1311 = vunpack.c.h.b16 %v673
      %v1312 = vunpack.c.l.b16 %v674
      %v1313 = vunpack.c.h.b16 %v674
      %v1314 = vunpack.c.l.b16 %v675
      %v1315 = vunpack.c.h.b16 %v675
      %v1316 = vunpack.c.l.b16 %v676
      %v1317 = vunpack.c.h.b16 %v676
      %v1318 = vunpack.c.l.b16 %v677
      %v1319 = vunpack.c.h.b16 %v677
      %v1320 = vunpack.c.l.b16 %v678
      %v1321 = vunpack.c.h.b16 %v678
      %v1322 = vunpack.c.l.b16 %v679
      %v1323 = vunpack.c.h.b16 %v679
      %v1324 = vunpack.c.l.b16 %v680
      %v1325 = vunpack.c.h.b16 %v680
      %v1326 = vunpack.c.l.b16 %v681
      %v1327 = vunpack.c.h.b16 %v681
      %v1328 = vunpack.c.l.b16 %v682
      %v1329 = vunpack.c.h.b16 %v682
      %v1330 = vunpack.c.l.b16 %v683
      %v1331 = vunpack.c.h.b16 %v683
      %v1332 = vunpack.c.l.b16 %v684
      %v1333 = vunpack.c.h.b16 %v684
      %v1334 = vunpack.c.l.b16 %v685
      %v1335 = vunpack.c.h.b16 %v685
      %v1336 = vunpack.c.l.b16 %v686
      %v1337 = vunpack.c.h.b16 %v686
      %v1338 = vunpack.c.l.b16 %v687
      %v1339 = vunpack.c.h.b16 %v687
      %v1340 = vunpack.c.l.b16 %v688
      %v1341 = vunpack.c.h.b16 %v688
      %v1342 = vunpack.c.l.b16 %v689
      %v1343 = vunpack.c.h.b16 %v689
      %v1344 = vunpack.c.l.b16 %v690
      %v1345 = vunpack.c.h.b16 %v690
      %v1346 = vunpack.c.l.b16 %v691
      %v1347 = vunpack.c.h.b16 %v691
      %v1348 = vunpack.c.l.b16 %v692
      %v1349 = vunpack.c.h.b16 %v692
      %v1350 = vunpack.c.l.b16 %v693
      %v1351 = vunpack.c.h.b16 %v693
      %v1352 = vunpack.c.l.b16 %v694
      %v1353 = vunpack.c.h.b16 %v694
      %v1354 = vunpack.c.l.b16 %v695
      %v1355 = vunpack.c.h.b16 %v695
      %v1356 = vunpack.c.l.b16 %v696
      %v1357 = vunpack.c.h.b16 %v696
      %v1358 = vunpack.c.l.b16 %v697
      %v1359 = vunpack.c.h.b16 %v697
      %v1360 = vunpack.c.l.b16 %v698
      %v1361 = vunpack.c.h.b16 %v698
      %v1362 = vunpack.c.l.b16 %v699
      %v1363 = vunpack.c.h.b16 %v699
      %v1364 = vunpack.c.l.b16 %v700
      %v1365 = vunpack.c.h.b16 %v700
      %v1366 = vunpack.c.l.b16 %v701
      %v1367 = vunpack.c.h.b16 %v701
      %v1368 = vunpack.c.l.b16 %v702
      %v1369 = vunpack.c.h.b16 %v702
      %v1370 = vunpack.c.l.b16 %v703
      %v1371 = vunpack.c.h.b16 %v703
      %v1372 = vunpack.c.l.b16 %v704
      %v1373 = vunpack.c.h.b16 %v704
      %v1374 = vunpack.c.l.b16 %v705
      %v1375 = vunpack.c.h.b16 %v705
      %v1376 = vunpack.c.l.b16 %v706
      %v1377 = vunpack.c.h.b16 %v706
      %v1378 = vunpack.c.l.b16 %v707
      %v1379 = vunpack.c.h.b16 %v707
      %v1380 = vunpack.c.l.b16 %v708
      %v1381 = vunpack.c.h.b16 %v708
      %v1382 = vunpack.c.l.b16 %v709
      %v1383 = vunpack.c.h.b16 %v709
      %v1384 = vunpack.c.l.b16 %v710
      %v1385 = vunpack.c.h.b16 %v710
      %v1386 = vunpack.c.l.b16 %v711
      %v1387 = vunpack.c.h.b16 %v711
      %v1388 = vunpack.c.l.b16 %v712
      %v1389 = vunpack.c.h.b16 %v712
      %v1390 = vunpack.c.l.b16 %v713
      %v1391 = vunpack.c.h.b16 %v713
      %v1392 = vunpack.c.l.b16 %v714
      %v1393 = vunpack.c.h.b16 %v714
      %v1394 = vunpack.c.l.b16 %v715
      %v1395 = vunpack.c.h.b16 %v715
      %v1396 = vunpack.c.l.b16 %v716
      %v1397 = vunpack.c.h.b16 %v716
      %v1398 = vunpack.c.l.b16 %v717
      %v1399 = vunpack.c.h.b16 %v717
      %v1400 = vunpack.c.l.b16 %v718
      %v1401 = vunpack.c.h.b16 %v718
      %v1402 = vunpack.c.l.b16 %v719
      %v1403 = vunpack.c.h.b16 %v719
      %v1404 = vunpack.c.l.b16 %v720
      %v1405 = vunpack.c.h.b16 %v720
      %v1406 = vunpack.c.l.b16 %v721
      %v1407 = vunpack.c.h.b16 %v721
      %v1408 = vunpack.c.l.b16 %v722
      %v1409 = vunpack.c.h.b16 %v722
      %v1410 = vunpack.c.l.b16 %v723
      %v1411 = vunpack.c.h.b16 %v723
      %v1412 = vunpack.c.l.b16 %v724
      %v1413 = vunpack.c.h.b16 %v724
      %v1414 = vunpack.c.l.b16 %v725
      %v1415 = vunpack.c.h.b16 %v725
      %v1416 = vunpack.c.l.b16 %v726
      %v1417 = vunpack.c.h.b16 %v726
      %v1418 = vunpack.c.l.b16 %v727
      %v1419 = vunpack.c.h.b16 %v727
      %v1420 = vunpack.c.l.b16 %v728
      %v1421 = vunpack.c.h.b16 %v728
      %v1422 = vunpack.c.l.b16 %v729
      %v1423 = vunpack.c.h.b16 %v729
      %v1424 = vunpack.c.l.b16 %v730
      %v1425 = vunpack.c.h.b16 %v730
      %v1426 = vunpack.c.l.b16 %v731
      %v1427 = vunpack.c.h.b16 %v731
      %v1428 = vunpack.c.l.b16 %v732
      %v1429 = vunpack.c.h.b16 %v732
      %v1430 = vunpack.c.l.b16 %v733
      %v1431 = vunpack.c.h.b16 %v733
      %v1432 = vunpack.c.l.b16 %v734
      %v1433 = vunpack.c.h.b16 %v734
      %v1434 = vunpack.c.l.b16 %v735
      %v1435 = vunpack.c.h.b16 %v735
      %v1436 = vunpack.c.l.b16 %v736
      %v1437 = vunpack.c.h.b16 %v736
      %v1438 = vunpack.c.l.b16 %v737
      %v1439 = vunpack.c.h.b16 %v737
      %v1440 = vunpack.c.l.b16 %v738
      %v1441 = vunpack.c.h.b16 %v738
      %v1442 = vunpack.c.l.b16 %v739
      %v1443 = vunpack.c.h.b16 %v739
      %v1444 = vunpack.c.l.b16 %v740
      %v1445 = vunpack.c.h.b16 %v740
      %v1446 = vunpack.c.l.b16 %v741
      %v1447 = vunpack.c.h.b16 %v741
      %v1448 = vunpack.c.l.b16 %v742
      %v1449 = vunpack.c.h.b16 %v742
      %v1450 = vunpack.c.l.b16 %v743
      %v1451 = vunpack.c.h.b16 %v743
      %v1452 = vunpack.c.l.b16 %v744
      %v1453 = vunpack.c.h.b16 %v744
      %v1454 = vunpack.c.l.b16 %v745
      %v1455 = vunpack.c.h.b16 %v745
      %v1456 = vunpack.c.l.b16 %v746
      %v1457 = vunpack.c.h.b16 %v746
      %v1458 = vunpack.c.l.b16 %v747
      %v1459 = vunpack.c.h.b16 %v747
      %v1460 = vunpack.c.l.b16 %v748
      %v1461 = vunpack.c.h.b16 %v748
      %v1462 = vunpack.c.l.b16 %v749
      %v1463 = vunpack.c.h.b16 %v749
      %v1464 = vunpack.c.l.b16 %v750
      %v1465 = vunpack.c.h.b16 %v750
      %v1466 = vunpack.c.l.b16 %v751
      %v1467 = vunpack.c.h.b16 %v751
      %v1468 = vunpack.c.l.b16 %v752
      %v1469 = vunpack.c.h.b16 %v752
      %v1470 = vunpack.c.l.b16 %v753
      %v1471 = vunpack.c.h.b16 %v753
      %v1472 = vunpack.c.l.b16 %v754
      %v1473 = vunpack.c.h.b16 %v754
      %v1474 = vunpack.c.l.b16 %v755
      %v1475 = vunpack.c.h.b16 %v755
      %v1476 = vunpack.c.l.b16 %v756
      %v1477 = vunpack.c.h.b16 %v756
      %v1478 = vunpack.c.l.b16 %v757
      %v1479 = vunpack.c.h.b16 %v757
      %v1480 = vunpack.c.l.b16 %v758
      %v1481 = vunpack.c.h.b16 %v758
      %v1482 = vunpack.c.l.b16 %v759
      %v1483 = vunpack.c.h.b16 %v759
      %v1484 = vunpack.c.l.b16 %v760
      %v1485 = vunpack.c.h.b16 %v760
      %v1486 = vunpack.c.l.b16 %v761
      %v1487 = vunpack.c.h.b16 %v761
      %v1488 = vunpack.c.l.b16 %v762
      %v1489 = vunpack.c.h.b16 %v762
      %v1490 = vunpack.c.l.b16 %v763
      %v1491 = vunpack.c.h.b16 %v763
      %v1492 = vunpack.c.l.b16 %v764
      %v1493 = vunpack.c.h.b16 %v764
      %v1494 = vunpack.c.l.b16 %v765
      %v1495 = vunpack.c.h.b16 %v765
      %v1496 = vunpack.c.l.b16 %v766
      %v1497 = vunpack.c.h.b16 %v766
      %v1498 = vunpack.c.l.b16 %v767
      %v1499 = vunpack.c.h.b16 %v767
      %v1500 = vunpack.c.l.b16 %v768
      %v1501 = vunpack.c.h.b16 %v768
      %v1502 = vunpack.c.l.b16 %v769
      %v1503 = vunpack.c.h.b16 %v769
      %v1504 = vunpack.c.l.b16 %v770
      %v1505 = vunpack.c.h.b16 %v770
      %v1506 = vunpack.c.l.b16 %v771
      %v1507 = vunpack.c.h.b16 %v771
      %v1508 = vunpack.c.l.b16 %v772
      %v1509 = vunpack.c.h.b16 %v772
      %v1510 = vunpack.c.l.b16 %v773
      %v1511 = vunpack.c.h.b16 %v773
      %v1512 = vunpack.c.l.b16 %v774
      %v1513 = vunpack.c.h.b16 %v774
      %v1514 = vunpack.c.l.b16 %v775
      %v1515 = vunpack.c.h.b16 %v775
      %v1516 = vunpack.c.l.b16 %v776
      %v1517 = vunpack.c.h.b16 %v776
      %v1518 = vunpack.c.l.b16 %v777
      %v1519 = vunpack.c.h.b16 %v777
      %v1520 = vunpack.c.l.b16 %v778
      %v1521 = vunpack.c.h.b16 %v778
      %v1522 = vunpack.c.l.b16 %v779
      %v1523 = vunpack.c.h.b16 %v779
      %v1524 = vunpack.c.l.b16 %v780
      %v1525 = vunpack.c.h.b16 %v780
      %v1526 = vunpack.c.l.b16 %v781
      %v1527 = vunpack.c.h.b16 %v781
      %v1528 = vunpack.c.l.b16 %v782
      %v1529 = vunpack.c.h.b16 %v782
      %v1530 = vunpack.c.l.b16 %v783
      %v1531 = vunpack.c.h.b16 %v783
      %v1532 = vunpack.c.l.b16 %v784
      %v1533 = vunpack.c.h.b16 %v784
      %v1534 = vunpack.c.l.b16 %v785
      %v1535 = vunpack.c.h.b16 %v785
      %v1536 = vunpack.c.l.b16 %v786
      %v1537 = vunpack.c.h.b16 %v786
      %v1538 = vunpack.c.l.b16 %v787
      %v1539 = vunpack.c.h.b16 %v787
      %v1540 = vunpack.c.l.b16 %v788
      %v1541 = vunpack.c.h.b16 %v788
      %v1542 = vunpack.c.l.b16 %v789
      %v1543 = vunpack.c.h.b16 %v789
      %v1544 = vunpack.c.l.b16 %v790
      %v1545 = vunpack.c.h.b16 %v790
      %v1546 = vunpack.c.l.b16 %v791
      %v1547 = vunpack.c.h.b16 %v791
      %v1548 = vunpack.c.l.b16 %v792
      %v1549 = vunpack.c.h.b16 %v792
      %v1550 = vunpack.c.l.b16 %v793
      %v1551 = vunpack.c.h.b16 %v793
      %v1552 = vunpack.c.l.b16 %v794
      %v1553 = vunpack.c.h.b16 %v794
      %v1554 = vunpack.c.l.b16 %v795
      %v1555 = vunpack.c.h.b16 %v795
      %v1556 = vunpack.c.l.b16 %v796
      %v1557 = vunpack.c.h.b16 %v796
      %v1558 = vunpack.c.l.b16 %v797
      %v1559 = vunpack.c.h.b16 %v797
      %v1560 = vunpack.c.l.b16 %v798
      %v1561 = vunpack.c.h.b16 %v798
      %v1562 = vunpack.c.l.b16 %v799
      %v1563 = vunpack.c.h.b16 %v799
      %v1564 = vunpack.c.l.b16 %v800
      %v1565 = vunpack.c.h.b16 %v800
      %v1566 = vunpack.c.l.b16 %v801
      %v1567 = vunpack.c.h.b16 %v801
      %v1568 = vunpack.c.l.b16 %v802
      %v1569 = vunpack.c.h.b16 %v802
      %v1570 = vunpack.c.l.b16 %v803
      %v1571 = vunpack.c.h.b16 %v803
      %v1572 = vunpack.c.l.b16 %v804
      %v1573 = vunpack.c.h.b16 %v804
      %v1574 = vunpack.c.l.b16 %v805
      %v1575 = vunpack.c.h.b16 %v805
      %v1576 = vunpack.c.l.b16 %v806
      %v1577 = vunpack.c.h.b16 %v806
      %v1578 = vunpack.c.l.b16 %v807
      %v1579 = vunpack.c.h.b16 %v807
      %v1580 = vunpack.c.l.b16 %v808
      %v1581 = vunpack.c.h.b16 %v808
      %v1582 = vunpack.c.l.b16 %v809
      %v1583 = vunpack.c.h.b16 %v809
      %v1584 = vunpack.c.l.b16 %v810
      %v1585 = vunpack.c.h.b16 %v810
      %v1586 = vunpack.c.l.b16 %v811
      %v1587 = vunpack.c.h.b16 %v811
      %v1588 = vunpack.c.l.b16 %v812
      %v1589 = vunpack.c.h.b16 %v812
      %v1590 = vunpack.c.l.b16 %v813
      %v1591 = vunpack.c.h.b16 %v813
      %v1592 = vunpack.c.l.b16 %v814
      %v1593 = vunpack.c.h.b16 %v814
      %v1594 = vunpack.c.l.b16 %v815
      %v1595 = vunpack.c.h.b16 %v815
      %v1596 = vunpack.c.l.b16 %v816
      %v1597 = vunpack.c.h.b16 %v816
      %v1598 = vunpack.c.l.b16 %v817
      %v1599 = vunpack.c.h.b16 %v817
      %v1600 = vpack.c.b16 %v1092, %v1088
      %v1601 = vpack.c.b16 %v1093, %v1089
      %v1602 = vpack.c.b16 %v1094, %v1090
      %v1603 = vpack.c.b16 %v1095, %v1091
      %v1604 = vpack.c.b16 %v1100, %v1096
      %v1605 = vpack.c.b16 %v1101, %v1097
      %v1606 = vpack.c.b16 %v1102, %v1098
      %v1607 = vpack.c.b16 %v1103, %v1099
      %v1608 = vpack.c.b16 %v1108, %v1104
      %v1609 = vpack.c.b16 %v1109, %v1105
      %v1610 = vpack.c.b16 %v1110, %v1106
      %v1611 = vpack.c.b16 %v1111, %v1107
      %v1612 = vpack.c.b16 %v1116, %v1112
      %v1613 = vpack.c.b16 %v1117, %v1113
      %v1614 = vpack.c.b16 %v1118, %v1114
      %v1615 = vpack.c.b16 %v1119, %v1115
      %v1616 = vpack.c.b16 %v1124, %v1120
      %v1617 = vpack.c.b16 %v1125, %v1121
      %v1618 = vpack.c.b16 %v1126, %v1122
      %v1619 = vpack.c.b16 %v1127, %v1123
      %v1620 = vpack.c.b16 %v1132, %v1128
      %v1621 = vpack.c.b16 %v1133, %v1129
      %v1622 = vpack.c.b16 %v1134, %v1130
      %v1623 = vpack.c.b16 %v1135, %v1131
      %v1624 = vpack.c.b16 %v1140, %v1136
      %v1625 = vpack.c.b16 %v1141, %v1137
      %v1626 = vpack.c.b16 %v1142, %v1138
      %v1627 = vpack.c.b16 %v1143, %v1139
      %v1628 = vpack.c.b16 %v1148, %v1144
      %v1629 = vpack.c.b16 %v1149, %v1145
      %v1630 = vpack.c.b16 %v1150, %v1146
      %v1631 = vpack.c.b16 %v1151, %v1147
      %v1632 = vpack.c.b16 %v1156, %v1152
      %v1633 = vpack.c.b16 %v1157, %v1153
      %v1634 = vpack.c.b16 %v1158, %v1154
      %v1635 = vpack.c.b16 %v1159, %v1155
      %v1636 = vpack.c.b16 %v1164, %v1160
      %v1637 = vpack.c.b16 %v1165, %v1161
      %v1638 = vpack.c.b16 %v1166, %v1162
      %v1639 = vpack.c.b16 %v1167, %v1163
      %v1640 = vpack.c.b16 %v1172, %v1168
      %v1641 = vpack.c.b16 %v1173, %v1169
      %v1642 = vpack.c.b16 %v1174, %v1170
      %v1643 = vpack.c.b16 %v1175, %v1171
      %v1644 = vpack.c.b16 %v1180, %v1176
      %v1645 = vpack.c.b16 %v1181, %v1177
      %v1646 = vpack.c.b16 %v1182, %v1178
      %v1647 = vpack.c.b16 %v1183, %v1179
      %v1648 = vpack.c.b16 %v1188, %v1184
      %v1649 = vpack.c.b16 %v1189, %v1185
      %v1650 = vpack.c.b16 %v1190, %v1186
      %v1651 = vpack.c.b16 %v1191, %v1187
      %v1652 = vpack.c.b16 %v1196, %v1192
      %v1653 = vpack.c.b16 %v1197, %v1193
      %v1654 = vpack.c.b16 %v1198, %v1194
      %v1655 = vpack.c.b16 %v1199, %v1195
      %v1656 = vpack.c.b16 %v1204, %v1200
      %v1657 = vpack.c.b16 %v1205, %v1201
      %v1658 = vpack.c.b16 %v1206, %v1202
      %v1659 = vpack.c.b16 %v1207, %v1203
      %v1660 = vpack.c.b16 %v1212, %v1208
      %v1661 = vpack.c.b16 %v1213, %v1209
      %v1662 = vpack.c.b16 %v1214, %v1210
      %v1663 = vpack.c.b16 %v1215, %v1211
      %v1664 = vpack.c.b16 %v1220, %v1216
      %v1665 = vpack.c.b16 %v1221, %v1217
      %v1666 = vpack.c.b16 %v1222, %v1218
      %v1667 = vpack.c.b16 %v1223, %v1219
      %v1668 = vpack.c.b16 %v1228, %v1224
      %v1669 = vpack.c.b16 %v1229, %v1225
      %v1670 = vpack.c.b16 %v1230, %v1226
      %v1671 = vpack.c.b16 %v1231, %v1227
      %v1672 = vpack.c.b16 %v1236, %v1232
      %v1673 = vpack.c.b16 %v1237, %v1233
      %v1674 = vpack.c.b16 %v1238, %v1234
      %v1675 = vpack.c.b16 %v1239, %v1235
      %v1676 = vpack.c.b16 %v1244, %v1240
      %v1677 = vpack.c.b16 %v1245, %v1241
      %v1678 = vpack.c.b16 %v1246, %v1242
      %v1679 = vpack.c.b16 %v1247, %v1243
      %v1680 = vpack.c.b16 %v1252, %v1248
      %v1681 = vpack.c.b16 %v1253, %v1249
      %v1682 = vpack.c.b16 %v1254, %v1250
      %v1683 = vpack.c.b16 %v1255, %v1251
      %v1684 = vpack.c.b16 %v1260, %v1256
      %v1685 = vpack.c.b16 %v1261, %v1257
      %v1686 = vpack.c.b16 %v1262, %v1258
      %v1687 = vpack.c.b16 %v1263, %v1259
      %v1688 = vpack.c.b16 %v1268, %v1264
      %v1689 = vpack.c.b16 %v1269, %v1265
      %v1690 = vpack.c.b16 %v1270, %v1266
      %v1691 = vpack.c.b16 %v1271, %v1267
      %v1692 = vpack.c.b16 %v1276, %v1272
      %v1693 = vpack.c.b16 %v1277, %v1273
      %v1694 = vpack.c.b16 %v1278, %v1274
      %v1695 = vpack.c.b16 %v1279, %v1275
      %v1696 = vpack.c.b16 %v1284, %v1280
      %v1697 = vpack.c.b16 %v1285, %v1281
      %v1698 = vpack.c.b16 %v1286, %v1282
      %v1699 = vpack.c.b16 %v1287, %v1283
      %v1700 = vpack.c.b16 %v1292, %v1288
      %v1701 = vpack.c.b16 %v1293, %v1289
      %v1702 = vpack.c.b16 %v1294, %v1290
      %v1703 = vpack.c.b16 %v1295, %v1291
      %v1704 = vpack.c.b16 %v1300, %v1296
      %v1705 = vpack.c.b16 %v1301, %v1297
      %v1706 = vpack.c.b16 %v1302, %v1298
      %v1707 = vpack.c.b16 %v1303, %v1299
      %v1708 = vpack.c.b16 %v1308, %v1304
      %v1709 = vpack.c.b16 %v1309, %v1305
      %v1710 = vpack.c.b16 %v1310, %v1306
      %v1711 = vpack.c.b16 %v1311, %v1307
      %v1712 = vpack.c.b16 %v1316, %v1312
      %v1713 = vpack.c.b16 %v1317, %v1313
      %v1714 = vpack.c.b16 %v1318, %v1314
      %v1715 = vpack.c.b16 %v1319, %v1315
      %v1716 = vpack.c.b16 %v1324, %v1320
      %v1717 = vpack.c.b16 %v1325, %v1321
      %v1718 = vpack.c.b16 %v1326, %v1322
      %v1719 = vpack.c.b16 %v1327, %v1323
      %v1720 = vpack.c.b16 %v1332, %v1328
      %v1721 = vpack.c.b16 %v1333, %v1329
      %v1722 = vpack.c.b16 %v1334, %v1330
      %v1723 = vpack.c.b16 %v1335, %v1331
      %v1724 = vpack.c.b16 %v1340, %v1336
      %v1725 = vpack.c.b16 %v1341, %v1337
      %v1726 = vpack.c.b16 %v1342, %v1338
      %v1727 = vpack.c.b16 %v1343, %v1339
      %v1728 = vpack.c.b16 %v1348, %v1344
      %v1729 = vpack.c.b16 %v1349, %v1345
      %v1730 = vpack.c.b16 %v1350, %v1346
      %v1731 = vpack.c.b16 %v1351, %v1347
      %v1732 = vpack.c.b16 %v1356, %v1352
      %v1733 = vpack.c.b16 %v1357, %v1353
      %v1734 = vpack.c.b16 %v1358, %v1354
      %v1735 = vpack.c.b16 %v1359, %v1355
      %v1736 = vpack.c.b16 %v1364, %v1360
      %v1737 = vpack.c.b16 %v1365, %v1361
      %v1738 = vpack.c.b16 %v1366, %v1362
      %v1739 = vpack.c.b16 %v1367, %v1363
      %v1740 = vpack.c.b16 %v1372, %v1368
      %v1741 = vpack.c.b16 %v1373, %v1369
      %v1742 = vpack.c.b16 %v1374, %v1370
      %v1743 = vpack.c.b16 %v1375, %v1371
      %v1744 = vpack.c.b16 %v1380, %v1376
      %v1745 = vpack.c.b16 %v1381, %v1377
      %v1746 = vpack.c.b16 %v1382, %v1378
      %v1747 = vpack.c.b16 %v1383, %v1379
      %v1748 = vpack.c.b16 %v1388, %v1384
      %v1749 = vpack.c.b16 %v1389, %v1385
      %v1750 = vpack.c.b16 %v1390, %v1386
      %v1751 = vpack.c.b16 %v1391, %v1387
      %v1752 = vpack.c.b16 %v1396, %v1392
      %v1753 = vpack.c.b16 %v1397, %v1393
      %v1754 = vpack.c.b16 %v1398, %v1394
      %v1755 = vpack.c.b16 %v1399, %v1395
      %v1756 = vpack.c.b16 %v1404, %v1400
      %v1757 = vpack.c.b16 %v1405, %v1401
      %v1758 = vpack.c.b16 %v1406, %v1402
      %v1759 = vpack.c.b16 %v1407, %v1403
      %v1760 = vpack.c.b16 %v1412, %v1408
      %v1761 = vpack.c.b16 %v1413, %v1409
      %v1762 = vpack.c.b16 %v1414, %v1410
      %v1763 = vpack.c.b16 %v1415, %v1411
      %v1764 = vpack.c.b16 %v1420, %v1416
      %v1765 = vpack.c.b16 %v1421, %v1417
      %v1766 = vpack.c.b16 %v1422, %v1418
      %v1767 = vpack.c.b16 %v1423, %v1419
      %v1768 = vpack.c.b16 %v1428, %v1424
      %v1769 = vpack.c.b16 %v1429, %v1425
      %v1770 = vpack.c.b16 %v1430, %v1426
      %v1771 = vpack.c.b16 %v1431, %v1427
      %v1772 = vpack.c.b16 %v1436, %v1432
      %v1773 = vpack.c.b16 %v1437, %v1433
      %v1774 = vpack.c.b16 %v1438, %v1434
      %v1775 = vpack.c.b16 %v1439, %v1435
      %v1776 = vpack.c.b16 %v1444, %v1440
      %v1777 = vpack.c.b16 %v1445, %v1441
      %v1778 = vpack.c.b16 %v1446, %v1442
      %v1779 = vpack.c.b16 %v1447, %v1443
      %v1780 = vpack.c.b16 %v1452, %v1448
      %v1781 = vpack.c.b16 %v1453, %v1449
      %v1782 = vpack.c.b16 %v1454, %v1450
      %v1783 = vpack.c.b16 %v1455, %v1451
      %v1784 = vpack.c.b16 %v1460, %v1456
      %v1785 = vpack.c.b16 %v1461, %v1457
      %v1786 = vpack.c.b16 %v1462, %v1458
      %v1787 = vpack.c.b16 %v1463, %v1459
      %v1788 = vpack.c.b16 %v1468, %v1464
      %v1789 = vpack.c.b16 %v1469, %v1465
      %v1790 = vpack.c.b16 %v1470, %v1466
      %v1791 = vpack.c.b16 %v1471, %v1467
      %v1792 = vpack.c.b16 %v1476, %v1472
      %v1793 = vpack.c.b16 %v1477, %v1473
      %v1794 = vpack.c.b16 %v1478, %v1474
      %v1795 = vpack.c.b16 %v1479, %v1475
      %v1796 = vpack.c.b16 %v1484, %v1480
      %v1797 = vpack.c.b16 %v1485, %v1481
      %v1798 = vpack.c.b16 %v1486, %v1482
      %v1799 = vpack.c.b16 %v1487, %v1483
      %v1800 = vpack.c.b16 %v1492, %v1488
      %v1801 = vpack.c.b16 %v1493, %v1489
      %v1802 = vpack.c.b16 %v1494, %v1490
      %v1803 = vpack.c.b16 %v1495, %v1491
      %v1804 = vpack.c.b16 %v1500, %v1496
      %v1805 = vpack.c.b16 %v1501, %v1497
      %v1806 = vpack.c.b16 %v1502, %v1498
      %v1807 = vpack.c.b16 %v1503, %v1499
      %v1808 = vpack.c.b16 %v1508, %v1504
      %v1809 = vpack.c.b16 %v1509, %v1505
      %v1810 = vpack.c.b16 %v1510, %v1506
      %v1811 = vpack.c.b16 %v1511, %v1507
      %v1812 = vpack.c.b16 %v1516, %v1512
      %v1813 = vpack.c.b16 %v1517, %v1513
      %v1814 = vpack.c.b16 %v1518, %v1514
      %v1815 = vpack.c.b16 %v1519, %v1515
      %v1816 = vpack.c.b16 %v1524, %v1520
      %v1817 = vpack.c.b16 %v1525, %v1521
      %v1818 = vpack.c.b16 %v1526, %v1522
      %v1819 = vpack.c.b16 %v1527, %v1523
      %v1820 = vpack.c.b16 %v1532, %v1528
      %v1821 = vpack.c.b16 %v1533, %v1529
      %v1822 = vpack.c.b16 %v1534, %v1530
      %v1823 = vpack.c.b16 %v1535, %v1531
      %v1824 = vpack.c.b16 %v1540, %v1536
      %v1825 = vpack.c.b16 %v1541, %v1537
      %v1826 = vpack.c.b16 %v1542, %v1538
      %v1827 = vpack.c.b16 %v1543, %v1539
      %v1828 = vpack.c.b16 %v1548, %v1544
      %v1829 = vpack.c.b16 %v1549, %v1545
      %v1830 = vpack.c.b16 %v1550, %v1546
      %v1831 = vpack.c.b16 %v1551, %v1547
      %v1832 = vpack.c.b16 %v1556, %v1552
      %v1833 = vpack.c.b16 %v1557, %v1553
      %v1834 = vpack.c.b16 %v1558, %v1554
      %v1835 = vpack.c.b16 %v1559, %v1555
      %v1836 = vpack.c.b16 %v1564, %v1560
      %v1837 = vpack.c.b16 %v1565, %v1561
      %v1838 = vpack.c.b16 %v1566, %v1562
      %v1839 = vpack.c.b16 %v1567, %v1563
      %v1840 = vpack.c.b16 %v1572, %v1568
      %v1841 = vpack.c.b16 %v1573, %v1569
      %v1842 = vpack.c.b16 %v1574, %v1570
      %v1843 = vpack.c.b16 %v1575, %v1571
      %v1844 = vpack.c.b16 %v1580, %v1576
      %v1845 = vpack.c.b16 %v1581, %v1577
      %v1846 = vpack.c.b16 %v1582, %v1578
      %v1847 = vpack.c.b16 %v1583, %v1579
      %v1848 = vpack.c.b16 %v1588, %v1584
      %v1849 = vpack.c.b16 %v1589, %v1585
      %v1850 = vpack.c.b16 %v1590, %v1586
      %v1851 = vpack.c.b16 %v1591, %v1587
      %v1852 = vpack.c.b16 %v1596, %v1592
      %v1853 = vpack.c.b16 %v1597, %v1593
      %v1854 = vpack.c.b16 %v1598, %v1594
      %v1855 = vpack.c.b16 %v1599, %v1595
      %2112 = vmatprep.subr.bf16.mxu0 %v1601
      %2113 = vmatpush1.bf16.xpose.msra.mxu0 %v1600
      %2114 = vmatprep.subr.bf16.mxu0 %v1605
      %2115 = vmatpush1.bf16.xpose.msra.mxu0 %v1604
      %2116 = vmatprep.subr.bf16.mxu0 %v1609
      %2117 = vmatpush1.bf16.xpose.msra.mxu0 %v1608
      %2118 = vmatprep.subr.bf16.mxu0 %v1613
      %2119 = vmatpush1.bf16.xpose.msra.mxu0 %v1612
      %2120 = vmatprep.subr.bf16.mxu0 %v1617
      %2121 = vmatpush1.bf16.xpose.msra.mxu0 %v1616
      %2122 = vmatprep.subr.bf16.mxu0 %v1621
      %2123 = vmatpush1.bf16.xpose.msra.mxu0 %v1620
      %2124 = vmatprep.subr.bf16.mxu0 %v1625
      %2125 = vmatpush1.bf16.xpose.msra.mxu0 %v1624
      %2126 = vmatprep.subr.bf16.mxu0 %v1629
      %2127 = vmatpush1.bf16.xpose.msra.mxu0 %v1628
      %2128 = vmatprep.subr.bf16.mxu0 %v1633
      %2129 = vmatpush1.bf16.xpose.msra.mxu0 %v1632
      %2130 = vmatprep.subr.bf16.mxu0 %v1637
      %2131 = vmatpush1.bf16.xpose.msra.mxu0 %v1636
      %2132 = vmatprep.subr.bf16.mxu0 %v1641
      %2133 = vmatpush1.bf16.xpose.msra.mxu0 %v1640
      %2134 = vmatprep.subr.bf16.mxu0 %v1645
      %2135 = vmatpush1.bf16.xpose.msra.mxu0 %v1644
      %2136 = vmatprep.subr.bf16.mxu0 %v1649
      %2137 = vmatpush1.bf16.xpose.msra.mxu0 %v1648
      %2138 = vmatprep.subr.bf16.mxu0 %v1653
      %2139 = vmatpush1.bf16.xpose.msra.mxu0 %v1652
      %2140 = vmatprep.subr.bf16.mxu0 %v1657
      %2141 = vmatpush1.bf16.xpose.msra.mxu0 %v1656
      %2142 = vmatprep.subr.bf16.mxu0 %v1661
      %2143 = vmatpush1.bf16.xpose.msra.mxu0 %v1660
      %2144 = vmatprep.mubr.bf16.mxu0 %v825
      %2145 = vmatmul.mubr.bf16.gmra.mrb[0].mxu0 %v824
      %v2146 = vpop.f32.mrb[0].mxu0
      %v2147 = vadd.f32 0.0, %v2146
      %v2148 = vpop.f32.mrb[0].mxu0
      %v2149 = vadd.f32 0.0, %v2148
      %v2150 = vpop.f32.mrb[0].mxu0
      %v2151 = vpop.f32.mrb[0].mxu0
      %2152 = vdwg.mxu0
      %2153 = vmatprep.subr.bf16.mxu0 %v1603
      %2154 = vmatpush1.bf16.xpose.msra.mxu0 %v1602
      %2155 = vmatprep.subr.bf16.mxu0 %v1607
      %2156 = vmatpush1.bf16.xpose.msra.mxu0 %v1606
      %2157 = vmatprep.subr.bf16.mxu0 %v1611
      %2158 = vmatpush1.bf16.xpose.msra.mxu0 %v1610
      %2159 = vmatprep.subr.bf16.mxu0 %v1615
      %2160 = vmatpush1.bf16.xpose.msra.mxu0 %v1614
      %2161 = vmatprep.subr.bf16.mxu0 %v1619
      %2162 = vmatpush1.bf16.xpose.msra.mxu0 %v1618
      %2163 = vmatprep.subr.bf16.mxu0 %v1623
      %2164 = vmatpush1.bf16.xpose.msra.mxu0 %v1622
      %2165 = vmatprep.subr.bf16.mxu0 %v1627
      %2166 = vmatpush1.bf16.xpose.msra.mxu0 %v1626
      %2167 = vmatprep.subr.bf16.mxu0 %v1631
      %2168 = vmatpush1.bf16.xpose.msra.mxu0 %v1630
      %2169 = vmatprep.subr.bf16.mxu0 %v1635
      %2170 = vmatpush1.bf16.xpose.msra.mxu0 %v1634
      %2171 = vmatprep.subr.bf16.mxu0 %v1639
      %2172 = vmatpush1.bf16.xpose.msra.mxu0 %v1638
      %2173 = vmatprep.subr.bf16.mxu0 %v1643
      %2174 = vmatpush1.bf16.xpose.msra.mxu0 %v1642
      %2175 = vmatprep.subr.bf16.mxu0 %v1647
      %2176 = vmatpush1.bf16.xpose.msra.mxu0 %v1646
      %2177 = vmatprep.subr.bf16.mxu0 %v1651
      %2178 = vmatpush1.bf16.xpose.msra.mxu0 %v1650
      %2179 = vmatprep.subr.bf16.mxu0 %v1655
      %2180 = vmatpush1.bf16.xpose.msra.mxu0 %v1654
      %2181 = vmatprep.subr.bf16.mxu0 %v1659
      %2182 = vmatpush1.bf16.xpose.msra.mxu0 %v1658
      %2183 = vmatprep.subr.bf16.mxu0 %v1663
      %2184 = vmatpush1.bf16.xpose.msra.mxu0 %v1662
      %2185 = vmatprep.mubr.bf16.mxu0 %v827
      %2186 = vmatmul.mubr.bf16.gmra.mrb[0].mxu0 %v826
      %v2187 = vpop.f32.mrb[0].mxu0
      %v2188 = vadd.f32 %v2147, %v2187
      %v2189 = vpop.f32.mrb[0].mxu0
      %v2190 = vadd.f32 %v2149, %v2189
      %v2191 = vpop.f32.mrb[0].mxu0
      %v2192 = vpop.f32.mrb[0].mxu0
      %2193 = vdwg.mxu0
      %2194 = vmatprep.subr.bf16.mxu0 %v1665
      %2195 = vmatpush1.bf16.xpose.msra.mxu0 %v1664
      %2196 = vmatprep.subr.bf16.mxu0 %v1669
      %2197 = vmatpush1.bf16.xpose.msra.mxu0 %v1668
      %2198 = vmatprep.subr.bf16.mxu0 %v1673
      %2199 = vmatpush1.bf16.xpose.msra.mxu0 %v1672
      %2200 = vmatprep.subr.bf16.mxu0 %v1677
      %2201 = vmatpush1.bf16.xpose.msra.mxu0 %v1676
      %2202 = vmatprep.subr.bf16.mxu0 %v1681
      %2203 = vmatpush1.bf16.xpose.msra.mxu0 %v1680
      %2204 = vmatprep.subr.bf16.mxu0 %v1685
      %2205 = vmatpush1.bf16.xpose.msra.mxu0 %v1684
      %2206 = vmatprep.subr.bf16.mxu0 %v1689
      %2207 = vmatpush1.bf16.xpose.msra.mxu0 %v1688
      %2208 = vmatprep.subr.bf16.mxu0 %v1693
      %2209 = vmatpush1.bf16.xpose.msra.mxu0 %v1692
      %2210 = vmatprep.subr.bf16.mxu0 %v1697
      %2211 = vmatpush1.bf16.xpose.msra.mxu0 %v1696
      %2212 = vmatprep.subr.bf16.mxu0 %v1701
      %2213 = vmatpush1.bf16.xpose.msra.mxu0 %v1700
      %2214 = vmatprep.subr.bf16.mxu0 %v1705
      %2215 = vmatpush1.bf16.xpose.msra.mxu0 %v1704
      %2216 = vmatprep.subr.bf16.mxu0 %v1709
      %2217 = vmatpush1.bf16.xpose.msra.mxu0 %v1708
      %2218 = vmatprep.subr.bf16.mxu0 %v1713
      %2219 = vmatpush1.bf16.xpose.msra.mxu0 %v1712
      %2220 = vmatprep.subr.bf16.mxu0 %v1717
      %2221 = vmatpush1.bf16.xpose.msra.mxu0 %v1716
      %2222 = vmatprep.subr.bf16.mxu0 %v1721
      %2223 = vmatpush1.bf16.xpose.msra.mxu0 %v1720
      %2224 = vmatprep.subr.bf16.mxu0 %v1725
      %2225 = vmatpush1.bf16.xpose.msra.mxu0 %v1724
      %2226 = vmatprep.mubr.bf16.mxu0 %v825
      %2227 = vmatmul.mubr.bf16.gmra.mrb[0].mxu0 %v824
      %v2228 = vpop.f32.mrb[0].mxu0
      %v2229 = vadd.f32 0.0, %v2228
      %v2230 = vpop.f32.mrb[0].mxu0
      %v2231 = vadd.f32 0.0, %v2230
      %v2232 = vpop.f32.mrb[0].mxu0
      %v2233 = vpop.f32.mrb[0].mxu0
      %2234 = vdwg.mxu0
      %2235 = vmatprep.subr.bf16.mxu0 %v1667
      %2236 = vmatpush1.bf16.xpose.msra.mxu0 %v1666
      %2237 = vmatprep.subr.bf16.mxu0 %v1671
      %2238 = vmatpush1.bf16.xpose.msra.mxu0 %v1670
      %2239 = vmatprep.subr.bf16.mxu0 %v1675
      %2240 = vmatpush1.bf16.xpose.msra.mxu0 %v1674
      %2241 = vmatprep.subr.bf16.mxu0 %v1679
      %2242 = vmatpush1.bf16.xpose.msra.mxu0 %v1678
      %2243 = vmatprep.subr.bf16.mxu0 %v1683
      %2244 = vmatpush1.bf16.xpose.msra.mxu0 %v1682
      %2245 = vmatprep.subr.bf16.mxu0 %v1687
      %2246 = vmatpush1.bf16.xpose.msra.mxu0 %v1686
      %2247 = vmatprep.subr.bf16.mxu0 %v1691
      %2248 = vmatpush1.bf16.xpose.msra.mxu0 %v1690
      %2249 = vmatprep.subr.bf16.mxu0 %v1695
      %2250 = vmatpush1.bf16.xpose.msra.mxu0 %v1694
      %2251 = vmatprep.subr.bf16.mxu0 %v1699
      %2252 = vmatpush1.bf16.xpose.msra.mxu0 %v1698
      %2253 = vmatprep.subr.bf16.mxu0 %v1703
      %2254 = vmatpush1.bf16.xpose.msra.mxu0 %v1702
      %2255 = vmatprep.subr.bf16.mxu0 %v1707
      %2256 = vmatpush1.bf16.xpose.msra.mxu0 %v1706
      %2257 = vmatprep.subr.bf16.mxu0 %v1711
      %2258 = vmatpush1.bf16.xpose.msra.mxu0 %v1710
      %2259 = vmatprep.subr.bf16.mxu0 %v1715
      %2260 = vmatpush1.bf16.xpose.msra.mxu0 %v1714
      %2261 = vmatprep.subr.bf16.mxu0 %v1719
      %2262 = vmatpush1.bf16.xpose.msra.mxu0 %v1718
      %2263 = vmatprep.subr.bf16.mxu0 %v1723
      %2264 = vmatpush1.bf16.xpose.msra.mxu0 %v1722
      %2265 = vmatprep.subr.bf16.mxu0 %v1727
      %2266 = vmatpush1.bf16.xpose.msra.mxu0 %v1726
      %2267 = vmatprep.mubr.bf16.mxu0 %v827
      %2268 = vmatmul.mubr.bf16.gmra.mrb[0].mxu0 %v826
      %v2269 = vpop.f32.mrb[0].mxu0
      %v2270 = vadd.f32 %v2229, %v2269
      %v2271 = vpop.f32.mrb[0].mxu0
      %v2272 = vadd.f32 %v2231, %v2271
      %v2273 = vpop.f32.mrb[0].mxu0
      %v2274 = vpop.f32.mrb[0].mxu0
      %2275 = vdwg.mxu0
      %2276 = vmatprep.subr.bf16.mxu0 %v1729
      %2277 = vmatpush1.bf16.xpose.msra.mxu0 %v1728
      %2278 = vmatprep.subr.bf16.mxu0 %v1733
      %2279 = vmatpush1.bf16.xpose.msra.mxu0 %v1732
      %2280 = vmatprep.subr.bf16.mxu0 %v1737
      %2281 = vmatpush1.bf16.xpose.msra.mxu0 %v1736
      %2282 = vmatprep.subr.bf16.mxu0 %v1741
      %2283 = vmatpush1.bf16.xpose.msra.mxu0 %v1740
      %2284 = vmatprep.subr.bf16.mxu0 %v1745
      %2285 = vmatpush1.bf16.xpose.msra.mxu0 %v1744
      %2286 = vmatprep.subr.bf16.mxu0 %v1749
      %2287 = vmatpush1.bf16.xpose.msra.mxu0 %v1748
      %2288 = vmatprep.subr.bf16.mxu0 %v1753
      %2289 = vmatpush1.bf16.xpose.msra.mxu0 %v1752
      %2290 = vmatprep.subr.bf16.mxu0 %v1757
      %2291 = vmatpush1.bf16.xpose.msra.mxu0 %v1756
      %2292 = vmatprep.subr.bf16.mxu0 %v1761
      %2293 = vmatpush1.bf16.xpose.msra.mxu0 %v1760
      %2294 = vmatprep.subr.bf16.mxu0 %v1765
      %2295 = vmatpush1.bf16.xpose.msra.mxu0 %v1764
      %2296 = vmatprep.subr.bf16.mxu0 %v1769
      %2297 = vmatpush1.bf16.xpose.msra.mxu0 %v1768
      %2298 = vmatprep.subr.bf16.mxu0 %v1773
      %2299 = vmatpush1.bf16.xpose.msra.mxu0 %v1772
      %2300 = vmatprep.subr.bf16.mxu0 %v1777
      %2301 = vmatpush1.bf16.xpose.msra.mxu0 %v1776
      %2302 = vmatprep.subr.bf16.mxu0 %v1781
      %2303 = vmatpush1.bf16.xpose.msra.mxu0 %v1780
      %2304 = vmatprep.subr.bf16.mxu0 %v1785
      %2305 = vmatpush1.bf16.xpose.msra.mxu0 %v1784
      %2306 = vmatprep.subr.bf16.mxu0 %v1789
      %2307 = vmatpush1.bf16.xpose.msra.mxu0 %v1788
      %2308 = vmatprep.mubr.bf16.mxu0 %v825
      %2309 = vmatmul.mubr.bf16.gmra.mrb[0].mxu0 %v824
      %v2310 = vpop.f32.mrb[0].mxu0
      %v2311 = vadd.f32 0.0, %v2310
      %v2312 = vpop.f32.mrb[0].mxu0
      %v2313 = vadd.f32 0.0, %v2312
      %v2314 = vpop.f32.mrb[0].mxu0
      %v2315 = vpop.f32.mrb[0].mxu0
      %2316 = vdwg.mxu0
      %2317 = vmatprep.subr.bf16.mxu0 %v1731
      %2318 = vmatpush1.bf16.xpose.msra.mxu0 %v1730
      %2319 = vmatprep.subr.bf16.mxu0 %v1735
      %2320 = vmatpush1.bf16.xpose.msra.mxu0 %v1734
      %2321 = vmatprep.subr.bf16.mxu0 %v1739
      %2322 = vmatpush1.bf16.xpose.msra.mxu0 %v1738
      %2323 = vmatprep.subr.bf16.mxu0 %v1743
      %2324 = vmatpush1.bf16.xpose.msra.mxu0 %v1742
      %2325 = vmatprep.subr.bf16.mxu0 %v1747
      %2326 = vmatpush1.bf16.xpose.msra.mxu0 %v1746
      %2327 = vmatprep.subr.bf16.mxu0 %v1751
      %2328 = vmatpush1.bf16.xpose.msra.mxu0 %v1750
      %2329 = vmatprep.subr.bf16.mxu0 %v1755
      %2330 = vmatpush1.bf16.xpose.msra.mxu0 %v1754
      %2331 = vmatprep.subr.bf16.mxu0 %v1759
      %2332 = vmatpush1.bf16.xpose.msra.mxu0 %v1758
      %2333 = vmatprep.subr.bf16.mxu0 %v1763
      %2334 = vmatpush1.bf16.xpose.msra.mxu0 %v1762
      %2335 = vmatprep.subr.bf16.mxu0 %v1767
      %2336 = vmatpush1.bf16.xpose.msra.mxu0 %v1766
      %2337 = vmatprep.subr.bf16.mxu0 %v1771
      %2338 = vmatpush1.bf16.xpose.msra.mxu0 %v1770
      %2339 = vmatprep.subr.bf16.mxu0 %v1775
      %2340 = vmatpush1.bf16.xpose.msra.mxu0 %v1774
      %2341 = vmatprep.subr.bf16.mxu0 %v1779
      %2342 = vmatpush1.bf16.xpose.msra.mxu0 %v1778
      %2343 = vmatprep.subr.bf16.mxu0 %v1783
      %2344 = vmatpush1.bf16.xpose.msra.mxu0 %v1782
      %2345 = vmatprep.subr.bf16.mxu0 %v1787
      %2346 = vmatpush1.bf16.xpose.msra.mxu0 %v1786
      %2347 = vmatprep.subr.bf16.mxu0 %v1791
      %2348 = vmatpush1.bf16.xpose.msra.mxu0 %v1790
      %2349 = vmatprep.mubr.bf16.mxu0 %v827
      %2350 = vmatmul.mubr.bf16.gmra.mrb[0].mxu0 %v826
      %v2351 = vpop.f32.mrb[0].mxu0
      %v2352 = vadd.f32 %v2311, %v2351
      %v2353 = vpop.f32.mrb[0].mxu0
      %v2354 = vadd.f32 %v2313, %v2353
      %v2355 = vpop.f32.mrb[0].mxu0
      %v2356 = vpop.f32.mrb[0].mxu0
      %2357 = vdwg.mxu0
      %2358 = vmatprep.subr.bf16.mxu0 %v1793
      %2359 = vmatpush1.bf16.xpose.msra.mxu0 %v1792
      %2360 = vmatprep.subr.bf16.mxu0 %v1797
      %2361 = vmatpush1.bf16.xpose.msra.mxu0 %v1796
      %2362 = vmatprep.subr.bf16.mxu0 %v1801
      %2363 = vmatpush1.bf16.xpose.msra.mxu0 %v1800
      %2364 = vmatprep.subr.bf16.mxu0 %v1805
      %2365 = vmatpush1.bf16.xpose.msra.mxu0 %v1804
      %2366 = vmatprep.subr.bf16.mxu0 %v1809
      %2367 = vmatpush1.bf16.xpose.msra.mxu0 %v1808
      %2368 = vmatprep.subr.bf16.mxu0 %v1813
      %2369 = vmatpush1.bf16.xpose.msra.mxu0 %v1812
      %2370 = vmatprep.subr.bf16.mxu0 %v1817
      %2371 = vmatpush1.bf16.xpose.msra.mxu0 %v1816
      %2372 = vmatprep.subr.bf16.mxu0 %v1821
      %2373 = vmatpush1.bf16.xpose.msra.mxu0 %v1820
      %2374 = vmatprep.subr.bf16.mxu0 %v1825
      %2375 = vmatpush1.bf16.xpose.msra.mxu0 %v1824
      %2376 = vmatprep.subr.bf16.mxu0 %v1829
      %2377 = vmatpush1.bf16.xpose.msra.mxu0 %v1828
      %2378 = vmatprep.subr.bf16.mxu0 %v1833
      %2379 = vmatpush1.bf16.xpose.msra.mxu0 %v1832
      %2380 = vmatprep.subr.bf16.mxu0 %v1837
      %2381 = vmatpush1.bf16.xpose.msra.mxu0 %v1836
      %2382 = vmatprep.subr.bf16.mxu0 %v1841
      %2383 = vmatpush1.bf16.xpose.msra.mxu0 %v1840
      %2384 = vmatprep.subr.bf16.mxu0 %v1845
      %2385 = vmatpush1.bf16.xpose.msra.mxu0 %v1844
      %2386 = vmatprep.subr.bf16.mxu0 %v1849
      %2387 = vmatpush1.bf16.xpose.msra.mxu0 %v1848
      %2388 = vmatprep.subr.bf16.mxu0 %v1853
      %2389 = vmatpush1.bf16.xpose.msra.mxu0 %v1852
      %2390 = vmatprep.mubr.bf16.mxu0 %v825
      %2391 = vmatmul.mubr.bf16.gmra.mrb[0].mxu0 %v824
      %v2392 = vpop.f32.mrb[0].mxu0
      %v2393 = vadd.f32 0.0, %v2392
      %v2394 = vpop.f32.mrb[0].mxu0
      %v2395 = vadd.f32 0.0, %v2394
      %v2396 = vpop.f32.mrb[0].mxu0
      %v2397 = vpop.f32.mrb[0].mxu0
      %2398 = vdwg.mxu0
      %2399 = vmatprep.subr.bf16.mxu0 %v1795
      %2400 = vmatpush1.bf16.xpose.msra.mxu0 %v1794
      %2401 = vmatprep.subr.bf16.mxu0 %v1799
      %2402 = vmatpush1.bf16.xpose.msra.mxu0 %v1798
      %2403 = vmatprep.subr.bf16.mxu0 %v1803
      %2404 = vmatpush1.bf16.xpose.msra.mxu0 %v1802
      %2405 = vmatprep.subr.bf16.mxu0 %v1807
      %2406 = vmatpush1.bf16.xpose.msra.mxu0 %v1806
      %2407 = vmatprep.subr.bf16.mxu0 %v1811
      %2408 = vmatpush1.bf16.xpose.msra.mxu0 %v1810
      %2409 = vmatprep.subr.bf16.mxu0 %v1815
      %2410 = vmatpush1.bf16.xpose.msra.mxu0 %v1814
      %2411 = vmatprep.subr.bf16.mxu0 %v1819
      %2412 = vmatpush1.bf16.xpose.msra.mxu0 %v1818
      %2413 = vmatprep.subr.bf16.mxu0 %v1823
      %2414 = vmatpush1.bf16.xpose.msra.mxu0 %v1822
      %2415 = vmatprep.subr.bf16.mxu0 %v1827
      %2416 = vmatpush1.bf16.xpose.msra.mxu0 %v1826
      %2417 = vmatprep.subr.bf16.mxu0 %v1831
      %2418 = vmatpush1.bf16.xpose.msra.mxu0 %v1830
      %2419 = vmatprep.subr.bf16.mxu0 %v1835
      %2420 = vmatpush1.bf16.xpose.msra.mxu0 %v1834
      %2421 = vmatprep.subr.bf16.mxu0 %v1839
      %2422 = vmatpush1.bf16.xpose.msra.mxu0 %v1838
      %2423 = vmatprep.subr.bf16.mxu0 %v1843
      %2424 = vmatpush1.bf16.xpose.msra.mxu0 %v1842
      %2425 = vmatprep.subr.bf16.mxu0 %v1847
      %2426 = vmatpush1.bf16.xpose.msra.mxu0 %v1846
      %2427 = vmatprep.subr.bf16.mxu0 %v1851
      %2428 = vmatpush1.bf16.xpose.msra.mxu0 %v1850
      %2429 = vmatprep.subr.bf16.mxu0 %v1855
      %2430 = vmatpush1.bf16.xpose.msra.mxu0 %v1854
      %2431 = vmatprep.mubr.bf16.mxu0 %v827
      %2432 = vmatmul.mubr.bf16.gmra.mrb[0].mxu0 %v826
      %v2433 = vpop.f32.mrb[0].mxu0
      %v2434 = vadd.f32 %v2393, %v2433
      %v2435 = vpop.f32.mrb[0].mxu0
      %v2436 = vadd.f32 %v2395, %v2435
      %v2437 = vpop.f32.mrb[0].mxu0
      %v2438 = vpop.f32.mrb[0].mxu0
      %2439 = vdwg.mxu0
      %v2440 = vsub.f32 1.0, %v2188
      %v2441 = vsub.f32 1.0, %v2190
      %v2442 = vsub.f32 1.0, %v2270
      %v2443 = vsub.f32 1.0, %v2272
      %v2444 = vsub.f32 1.0, %v2352
      %v2445 = vsub.f32 1.0, %v2354
      %v2446 = vsub.f32 1.0, %v2434
      %v2447 = vsub.f32 1.0, %v2436
      %v2448 = vsub.f32 %v2440, 0.3
      %v2449 = vsub.f32 %v2441, 0.3
      %v2450 = vsub.f32 %v2442, 0.3
      %v2451 = vsub.f32 %v2443, 0.3
      %v2452 = vsub.f32 %v2444, 0.3
      %v2453 = vsub.f32 %v2445, 0.3
      %v2454 = vsub.f32 %v2446, 0.3
      %v2455 = vsub.f32 %v2447, 0.3
      %v2456 = vand.u32 2147483647, %v2448
      %v2457 = vand.u32 2147483647, %v2449
      %v2458 = vand.u32 2147483647, %v2450
      %v2459 = vand.u32 2147483647, %v2451
      %v2460 = vand.u32 2147483647, %v2452
      %v2461 = vand.u32 2147483647, %v2453
      %v2462 = vand.u32 2147483647, %v2454
      %v2463 = vand.u32 2147483647, %v2455
      %s2464 = smul.u32 %s19, 2
      %s2465 = sadd.s32 %s2464, %s20
      %s2466 = smul.u32 %s2465, 1024
      %v2467 = vlaneseq
      %v2468 = vand.u32 %v2467, 127
      %v2469 = vadd.s32 %v2468, 128
      %v2470 = vadd.s32 %v2468, 256
      %v2471 = vadd.s32 %v2468, 384
      %v2472 = vadd.s32 %v2468, 512
      %v2473 = vadd.s32 %v2468, 640
      %v2474 = vadd.s32 %v2468, 768
      %v2475 = vadd.s32 %v2468, 896
      %v2476 = vstv %s2466
      %v2477 = vadd.s32 %v2468, %v2476
      %v2478 = vadd.s32 %v2469, %v2476
      %v2479 = vadd.s32 %v2470, %v2476
      %v2480 = vadd.s32 %v2471, %v2476
      %v2481 = vadd.s32 %v2472, %v2476
      %v2482 = vadd.s32 %v2473, %v2476
      %v2483 = vadd.s32 %v2474, %v2476
      %v2484 = vadd.s32 %v2475, %v2476
      %vm2485 = vcmp.lt.s32.totalorder %v2477, 4000
      %vm2486 = vcmp.lt.s32.totalorder %v2478, 4000
      %vm2487 = vcmp.lt.s32.totalorder %v2479, 4000
      %vm2488 = vcmp.lt.s32.totalorder %v2480, 4000
      %vm2489 = vcmp.lt.s32.totalorder %v2481, 4000
      %vm2490 = vcmp.lt.s32.totalorder %v2482, 4000
      %vm2491 = vcmp.lt.s32.totalorder %v2483, 4000
      %vm2492 = vcmp.lt.s32.totalorder %v2484, 4000
      %v2493 = vsel %vm2485, %v2456, inf
      %v2494 = vsel %vm2486, %v2457, inf
      %v2495 = vsel %vm2487, %v2458, inf
      %v2496 = vsel %vm2488, %v2459, inf
      %v2497 = vsel %vm2489, %v2460, inf
      %v2498 = vsel %vm2490, %v2461, inf
      %v2499 = vsel %vm2491, %v2462, inf
      %v2500 = vsel %vm2492, %v2463, inf
      %v2501 = vmin.f32 %v2493, %v2497
      %v2502 = vmin.f32 %v2494, %v2498
      %v2503 = vmin.f32 %v2495, %v2499
      %v2504 = vmin.f32 %v2496, %v2500
      %v2505 = vmin.f32 %v2501, %v2502
      %v2506 = vmin.f32 %v2503, %v2504
      %v2507 = vmin.f32 %v2505, %v2506
      %2508 = vmin.xlane.f32.xlu0 %v2507
      %v2509 = vpop.xlane.xlu0 %2508
      %vm2510 = vcmp.eq.f32.partialorder %v2493, %v2509
      %vm2511 = vcmp.eq.f32.partialorder %v2494, %v2509
      %vm2512 = vcmp.eq.f32.partialorder %v2495, %v2509
      %vm2513 = vcmp.eq.f32.partialorder %v2496, %v2509
      %vm2514 = vcmp.eq.f32.partialorder %v2497, %v2509
      %vm2515 = vcmp.eq.f32.partialorder %v2498, %v2509
      %vm2516 = vcmp.eq.f32.partialorder %v2499, %v2509
      %vm2517 = vcmp.eq.f32.partialorder %v2500, %v2509
      %v2518 = vsel %vm2510, %v2477, 1073741824
      %v2519 = vsel %vm2511, %v2478, 1073741824
      %v2520 = vsel %vm2512, %v2479, 1073741824
      %v2521 = vsel %vm2513, %v2480, 1073741824
      %v2522 = vsel %vm2514, %v2481, 1073741824
      %v2523 = vsel %vm2515, %v2482, 1073741824
      %v2524 = vsel %vm2516, %v2483, 1073741824
      %v2525 = vsel %vm2517, %v2484, 1073741824
      %vm2526 = vcmp.lt.s32.totalorder %v2518, %v2522
      %v2527 = vsel %vm2526, %v2518, %v2522
      %vm2528 = vcmp.lt.s32.totalorder %v2519, %v2523
      %v2529 = vsel %vm2528, %v2519, %v2523
      %vm2530 = vcmp.lt.s32.totalorder %v2520, %v2524
      %v2531 = vsel %vm2530, %v2520, %v2524
      %vm2532 = vcmp.lt.s32.totalorder %v2521, %v2525
      %v2533 = vsel %vm2532, %v2521, %v2525
      %vm2534 = vcmp.lt.s32.totalorder %v2527, %v2529
      %v2535 = vsel %vm2534, %v2527, %v2529
      %vm2536 = vcmp.lt.s32.totalorder %v2531, %v2533
      %v2537 = vsel %vm2536, %v2531, %v2533
      %vm2538 = vcmp.lt.s32.totalorder %v2535, %v2537
      %v2539 = vsel %vm2538, %v2535, %v2537
      %v2540 = vand.u32 %v2539, 65535
      %v2541 = vshra.s32 %v2539, 16
      %v2542 = vcvt.s32.f32 %v2540
      %v2543 = vcvt.s32.f32 %v2541
      %2544 = vmin.xlane.f32.xlu0 %v2543
      %v2545 = vpop.xlane.xlu0 %2544
      %vm2546 = vcmp.eq.f32.partialorder %v2543, %v2545
      %v2547 = vsel %vm2546, %v2542, inf
      %2548 = vmin.xlane.f32.xlu0 %v2547
      %v2549 = vpop.xlane.xlu0 %2548
      %v2550 = vcvt.f32.s32 %v2549
      %v2551 = vcvt.f32.s32 %v2545
      %v2552 = vshll.u32 %v2551, 16
      %v2553 = vadd.s32 %v2552, %v2550
      %v2554 = vld [vmem:[#allocation3] sm:$0xff]
      %vm2555 = vcmp.lt.f32.partialorder %v2509, %v2554
      %v2556 = vld [vmem:[#allocation4] sm:$0xff]
      %v2557 = vsel %vm2555, %v2553, %v2556
      %vm2558 = vcmask 7168
      %2559 = vst.msk [vmem:[#allocation4] sm:$0xff] %vm2558, %v2557
      %v2560 = vld [vmem:[#allocation3] sm:$0xff]
      %v2561 = vsel %vm2555, %v2509, %v2560
      %2562 = vst.msk [vmem:[#allocation3] sm:$0xff] %vm2558, %v2561
      %p2563 = scmp.eq.s32.totalorder %s20, 1
      // Predicated region
      $region33: #{tracker_forward.1} parent=27 // pred_check
        %p2564 = pneg %p2563
      $region34: #{tracker_forward.1} parent=27 // pred_check_branch
        %2566 = sbr.rel (%p2564) target = $region36
      $region35: #{tracker_forward.1} parent=27 // pred_region
        %v2567 = vld [vmem:[#allocation3] sm:$0xff]
        %2568 = vst.msk [vmem:[%s206] sm:$0xff] %vm2558, %v2567
        %v2569 = vld [vmem:[#allocation4] sm:$0xff]
        %2570 = vst.msk [vmem:[%s210] sm:$0xff] %vm2558, %v2569
      $region36: #{tracker_forward.1} parent=27 // pred_fallthru
        _
      %p2571 = scmp.lt.s32.totalorder %s19, 1
      %s2572 = scalar_select %p2571, %s19, 1
      %s2573 = smul.addr %s2572, 8
      %s2574 = scalar_lea.vmem %s2, %s2573
      %p2575 = scmp.lt.s32.totalorder %s19, 1
      %s2576 = scalar_select %p2575, %s19, 1
      %s2577 = smul.addr %s2576, 8
      %s2578 = scalar_lea.vmem %s3, %s2577
      // Predicated region
      $region37: #{tracker_forward.1} parent=27 // pred_check
        %p2579 = pneg %p96
      $region38: #{tracker_forward.1} parent=27 // pred_check_branch
        %2581 = sbr.rel (%p2579) target = $region40
      $region39: #{tracker_forward.1} parent=27 // pred_region
        _
      $region40: #{tracker_forward.1} parent=27 // pred_fallthru
        _
      // Predicated region
      $region41: #{tracker_forward.1} parent=27 // pred_check
        %p2582 = pneg %p122
      $region42: #{tracker_forward.1} parent=27 // pred_check_branch
        %2584 = sbr.rel (%p2582) target = $region44
      $region43: #{tracker_forward.1} parent=27 // pred_region
        _
      $region44: #{tracker_forward.1} parent=27 // pred_fallthru
        _
    $region28: #{tracker_forward.1} parent=5 // pred_fallthru
      _
    %p2585 = scmp.le.s32.totalorder 2, %s10
    // Predicated region
    $region45: #{tracker_forward.1} parent=5 // pred_check
      %p2586 = pneg %p2585
    $region46: #{tracker_forward.1} parent=5 // pred_check_branch
      %2588 = sbr.rel (%p2586) target = $region48
    $region47: #{tracker_forward.1} parent=5 // pred_region
      %s2589 = ssub.s32 %s10, 2
      // Predicated region
      $region49: #{tracker_forward.1} parent=47 // pred_check
        %p2590 = pneg %p102
      $region50: #{tracker_forward.1} parent=47 // pred_check_branch
        %2592 = sbr.rel (%p2590) target = $region52
      $region51: #{tracker_forward.1} parent=47 // pred_region
        %p2593 = scmp.lt.s32.totalorder %s21, 1
        %s2594 = scalar_select %p2593, %s21, 1
        %s2595 = smul.addr %s2594, 8
        %s2596 = scalar_lea.vmem %s2, %s2595
      $region52: #{tracker_forward.1} parent=47 // pred_fallthru
        _
      // Predicated region
      $region53: #{tracker_forward.1} parent=47 // pred_check
        %p2597 = pneg %p128
      $region54: #{tracker_forward.1} parent=47 // pred_check_branch
        %2599 = sbr.rel (%p2597) target = $region56
      $region55: #{tracker_forward.1} parent=47 // pred_region
        %p2600 = scmp.lt.s32.totalorder %s21, 1
        %s2601 = scalar_select %p2600, %s21, 1
        %s2602 = smul.addr %s2601, 8
        %s2603 = scalar_lea.vmem %s3, %s2602
      $region56: #{tracker_forward.1} parent=47 // pred_fallthru
        _
    $region48: #{tracker_forward.1} parent=5 // pred_fallthru
      _
  $region6: #{tracker_forward.1} parent=0 // loop_footer
    %s14 = sadd.s32 1, %s10
  $region7: #{tracker_forward.1} parent=0 // loop_footer_branch
    %9 = sbr.rel target = $region3
  $region8: #{tracker_forward.1} parent=0 // loop_exit
    _

</llo_original>
